<compile_context>
chip_gen: v7x
topology: tpu7x:2x2x1
jax: 0.10.0
libtpu: 0.0.40
codegen_flags: <defaults>
</compile_context>

<pallas_src>
import functools

import jax
import jax.numpy as jnp
import numpy as np
from jax import lax
from jax.experimental import pallas as pl
from jax.experimental.pallas import tpu as pltpu


def _round_up(x, m):
  return (x + m - 1) // m * m


def _pick_row_tile(H, W, target_rows):
  """Largest divisor TH of H with TH*W <= max(W, target_rows)."""
  th = 1
  for d in range(1, H + 1):
    if H % d == 0 and d * W <= max(W, target_rows):
      th = d
  return th


# ----------------------------------------------------------------------------
# Pass 1: conv (im2col + single MXU matmul) + per-tile BN partial statistics.
# ----------------------------------------------------------------------------
def _conv_stats_kernel(x_ref, w_ref, y_ref, stats_ref, patch_ref, *,
                       TH, W, Cin_p, KH, KW, rows_from_grid):
  """One (batch, row-tile) grid step.

  x_ref     : resident path -> (Hp, Wp, Cin_p) whole padded image of batch n
              gather   path -> (THp, Wp, Cin_p) haloed row tile
  w_ref     : (KH*KW*Cin_p, Cout_p)   reshaped conv weight
  y_ref     : (TH*W, Cout_p)          conv output tile (lane-dense, f32)
  stats_ref : (2, Cout_p)             per-tile [sum; sum_of_squares]
  patch_ref : VMEM scratch (TH*W, KH*KW*Cin_p)  im2col patch
  """
  TILE_M = TH * W
  # Resident path: halo rows are sliced straight out of the per-batch VMEM
  # image (input block index ignores the row-tile axis -> DMA'd once per n).
  row0 = pl.program_id(1) * TH if rows_from_grid else 0

  # Build the im2col patch ONCE per tile into VMEM scratch, then issue a
  # single matmul with contraction dim KH*KW*Cin_p (instead of KH*KW tiny
  # matmuls each paying full MXU push/pop overhead).
  for kh in range(KH):
    for kw in range(KW):
      tap = kh * KW + kw
      patch_ref[:, tap * Cin_p:(tap + 1) * Cin_p] = (
          x_ref[pl.ds(row0 + kh, TH), kw:kw + W, :].reshape(TILE_M, Cin_p))

  acc = jnp.dot(patch_ref[...], w_ref[...],
                preferred_element_type=jnp.float32)

  y_ref[...] = acc.astype(y_ref.dtype)
  # Per-tile partial BN statistics (f32); reduced across tiles in the wrapper
  # so the batch statistics stay exactly global over N*H*W per channel.
  stats_ref[0:1, :] = jnp.sum(acc, axis=0, keepdims=True)
  stats_ref[1:2, :] = jnp.sum(acc * acc, axis=0, keepdims=True)


# ----------------------------------------------------------------------------
# Pass 2: BatchNorm affine (pre-folded scale/bias) + ReLU epilogue.
# ----------------------------------------------------------------------------
def _bn_act_kernel(y_ref, scale_ref, bias_ref, o_ref, *, need_act):
  """y_ref: (TILE_M, Cout_p) f32 conv tile; scale/bias: (1, Cout_p) f32."""
  y = y_ref[...] * scale_ref[...] + bias_ref[...]
  if need_act:
    y = jnp.maximum(y, 0.0)
  o_ref[...] = y.astype(o_ref.dtype)


# ----------------------------------------------------------------------------
# Wrapper matching Conv.forward: x NCHW -> conv -> BN -> ReLU -> NCHW.
# ----------------------------------------------------------------------------
def conv_bn_relu(x_nchw, weight, gamma, beta, *, stride=1, dilation=1,
                 groups=1, eps=1e-5, need_act=True, tile_m_target=512):
  # TODO(synk): only the module defaults (stride=1, dilation=1, groups=1) are
  # implemented; other configs need a different index map / gather.
  assert stride == 1 and dilation == 1 and groups == 1

  Cout, Cin, KH, KW = weight.shape
  assert KH % 2 == 1 and KW % 2 == 1, "auto_pad 'same' assumes odd kernel"
  N, C, H, W = x_nchw.shape
  assert C == Cin

  pad_h = (KH - 1) // 2
  pad_w = (KW - 1) // 2

  LANE, SUBLANE = 128, 8
  Cin_p = _round_up(Cin, SUBLANE)     # sublane-aligned contraction slices
  Cout_p = _round_up(Cout, LANE)      # lane-dense output stores

  TH = _pick_row_tile(H, W, tile_m_target)
  nHt = H // TH
  TILE_M = TH * W
  THp = TH + KH - 1
  Hp = H + 2 * pad_h
  Wp = W + 2 * pad_w
  Kdim = KH * KW * Cin_p

  compute_dtype = x_nchw.dtype        # bf16 callers feed bf16 to the MXU
  itemsize = jnp.dtype(compute_dtype).itemsize

  # ---- host-side layout prep --------------------------------------------
  # TODO(synk): the NCHW<->NHWC transposes are wrapper-side layout plumbing.
  x_nhwc = jnp.transpose(x_nchw, (0, 2, 3, 1))
  xp = jnp.pad(x_nhwc, ((0, 0), (pad_h, pad_h), (pad_w, pad_w),
                        (0, Cin_p - Cin))).astype(compute_dtype)

  # Weight (Cout, Cin, KH, KW) -> (KH*KW*Cin_p, Cout_p), matching im2col order.
  w = jnp.transpose(weight, (2, 3, 1, 0))
  w = jnp.pad(w, ((0, 0), (0, 0), (0, Cin_p - Cin), (0, Cout_p - Cout)))
  w2d = w.reshape(Kdim, Cout_p).astype(compute_dtype)

  # Resident path if the whole padded image of one batch fits comfortably in
  # VMEM (Mosaic pads minor dims to (8, 128)); double-buffered by the runtime.
  x_block_bytes = (Hp * _round_up(Wp, SUBLANE) * _round_up(Cin_p, LANE)
                   * itemsize)
  resident = 2 * x_block_bytes <= 8 * 1024 * 1024

  cparams = pltpu.CompilerParams(
      dimension_semantics=("parallel", "parallel"),   # disjoint outputs -> 2 TCs on v7x
      vmem_limit_bytes=32 * 1024 * 1024)

  # ---- pass 1: conv + partial stats --------------------------------------
  kernel1 = functools.partial(_conv_stats_kernel, TH=TH, W=W, Cin_p=Cin_p,
                              KH=KH, KW=KW, rows_from_grid=resident)

  if resident:
    x_in = xp
    x_spec = pl.BlockSpec((None, Hp, Wp, Cin_p), lambda n, t: (n, 0, 0, 0))
    x_bytes = xp.size * itemsize
  else:
    # Fallback for very large feature maps: explicit haloed row-tile gather.
    # TODO(synk): an Element-indexed halo BlockSpec would remove this extra
    # HBM pass for the large-image case too.
    row_idx = jnp.arange(nHt)[:, None] * TH + jnp.arange(THp)[None, :]
    x_in = xp[:, row_idx]
    x_spec = pl.BlockSpec((None, None, THp, Wp, Cin_p),
                          lambda n, t: (n, t, 0, 0, 0))
    x_bytes = x_in.size * itemsize

  cost1 = pl.CostEstimate(
      flops=2 * N * H * W * KH * KW * Cin_p * Cout_p,
      transcendentals=0,
      bytes_accessed=int(x_bytes + w2d.size * itemsize
                         + N * H * W * Cout_p * 4
                         + N * nHt * 2 * Cout_p * 4))

  y, stats = pl.pallas_call(
      kernel1,
      out_shape=(jax.ShapeDtypeStruct((N, nHt, TILE_M, Cout_p), jnp.float32),
                 jax.ShapeDtypeStruct((N, nHt, 2, Cout_p), jnp.float32)),
      grid_spec=pltpu.PrefetchScalarGridSpec(
          num_scalar_prefetch=0,
          grid=(N, nHt),
          in_specs=[
              x_spec,
              pl.BlockSpec((Kdim, Cout_p), lambda n, t: (0, 0)),
          ],
          out_specs=[
              pl.BlockSpec((None, None, TILE_M, Cout_p),
                           lambda n, t: (n, t, 0, 0)),
              pl.BlockSpec((None, None, 2, Cout_p),
                           lambda n, t: (n, t, 0, 0)),
          ],
          scratch_shapes=[pltpu.VMEM((TILE_M, Kdim), compute_dtype)]),
      compiler_params=cparams,
      cost_estimate=cost1,
  )(x_in, w2d)

  # ---- tiny cross-tile reduction + BN folding (host/XLA side) -------------
  stats_total = jnp.sum(stats, axis=(0, 1))            # (2, Cout_p) f32
  count = float(N * H * W)
  mean = stats_total[0] / count
  # Biased variance; clamp tiny negatives from E[x^2]-mean^2 cancellation.
  var = jnp.maximum(stats_total[1] / count - mean * mean, 0.0)
  inv_std = lax.rsqrt(var + eps)
  gamma_p = jnp.pad(gamma.astype(jnp.float32), (0, Cout_p - Cout))
  beta_p = jnp.pad(beta.astype(jnp.float32), (0, Cout_p - Cout))
  scale = (gamma_p * inv_std).reshape(1, Cout_p)
  bias = (beta_p - mean * gamma_p * inv_std).reshape(1, Cout_p)

  # ---- pass 2: folded BN affine + ReLU epilogue ---------------------------
  kernel2 = functools.partial(_bn_act_kernel, need_act=need_act)
  out_itemsize = jnp.dtype(x_nchw.dtype).itemsize
  cost2 = pl.CostEstimate(
      flops=3 * N * nHt * TILE_M * Cout_p,
      transcendentals=0,
      bytes_accessed=int(N * nHt * TILE_M * Cout_p * (4 + out_itemsize)))

  out_t = pl.pallas_call(
      kernel2,
      out_shape=jax.ShapeDtypeStruct((N, nHt, TILE_M, Cout_p), x_nchw.dtype),
      grid_spec=pltpu.PrefetchScalarGridSpec(
          num_scalar_prefetch=0,
          grid=(N, nHt),
          in_specs=[
              pl.BlockSpec((None, None, TILE_M, Cout_p),
                           lambda n, t: (n, t, 0, 0)),
              pl.BlockSpec((1, Cout_p), lambda n, t: (0, 0)),
              pl.BlockSpec((1, Cout_p), lambda n, t: (0, 0)),
          ],
          out_specs=pl.BlockSpec((None, None, TILE_M, Cout_p),
                                 lambda n, t: (n, t, 0, 0))),
      compiler_params=cparams,
      cost_estimate=cost2,
  )(y, scale, bias)

  # (N, nHt, TH*W, Cout_p) -> NCHW, dropping channel padding.
  out5 = out_t.reshape(N, nHt, TH, W, Cout_p)[..., :Cout]
  return jnp.transpose(out5, (0, 4, 1, 2, 3)).reshape(N, Cout, H, W)


# ----------------------------------------------------------------------------
# Pure-JAX reference: conv2d 'same' + training-mode BN + ReLU (NCHW).
# ----------------------------------------------------------------------------
def _reference(x_nchw, weight, gamma, beta, eps=1e-5):
  KH, KW = weight.shape[2], weight.shape[3]
  ph, pw = (KH - 1) // 2, (KW - 1) // 2
  conv = lax.conv_general_dilated(
      x_nchw, weight, window_strides=(1, 1),
      padding=((ph, ph), (pw, pw)),
      dimension_numbers=('NCHW', 'OIHW', 'NCHW'))
  mean = conv.mean(axis=(0, 2, 3), keepdims=True)
  var = ((conv - mean) ** 2).mean(axis=(0, 2, 3), keepdims=True)
  y = (conv - mean) / jnp.sqrt(var + eps)
  y = y * gamma.reshape(1, -1, 1, 1) + beta.reshape(1, -1, 1, 1)
  return jnp.maximum(y, 0.0)


if __name__ == "__main__":
  key = jax.random.PRNGKey(0)
  k_x, k_w, k_g, k_b = jax.random.split(key, 4)

  N, Cin, H, W = 2, 4, 16, 16
  Cout, K = 8, 3

  x = jax.random.normal(k_x, (N, Cin, H, W), dtype=jnp.float32)
  # Deterministic synthetic parameters (no checkpoint load).
  fan_in = Cin * K * K
  weight = jax.random.normal(k_w, (Cout, Cin, K, K), jnp.float32) / np.sqrt(fan_in)
  gamma = 1.0 + 0.1 * jax.random.normal(k_g, (Cout,), jnp.float32)
  beta = 0.1 * jax.random.normal(k_b, (Cout,), jnp.float32)

  # tile_m_target=128 -> TH=8, nHt=2: exercises the multi-tile grid, the
  # resident per-batch input block with in-kernel halo slicing, and the
  # cross-tile BN-statistics reduction at this small test shape.
  out = conv_bn_relu(x, weight, gamma, beta, tile_m_target=128)
  out = jax.block_until_ready(out)

  ref = _reference(x, weight, gamma, beta)
  np.testing.assert_allclose(np.asarray(out), np.asarray(ref),
                             rtol=2e-4, atol=2e-4)
  print("KERNEL_OK")
</pallas_src>

<mosaic_0001>
module attributes {stable_mosaic.version = 11 : i64} {
  func.func @_conv_stats_kernel(%arg0: i32, %arg1: i32, %arg2: memref<1x18x18x8xf32, #tpu.memory_space<vmem>>, %arg3: memref<72x128xf32, #tpu.memory_space<vmem>>, %arg4: memref<1x1x128x128xf32, #tpu.memory_space<vmem>>, %arg5: memref<1x1x2x128xf32, #tpu.memory_space<vmem>>, %arg6: memref<128x72xf32, #tpu.memory_space<vmem>>) attributes {dimension_semantics = [#tpu.dimension_semantics<parallel>, #tpu.dimension_semantics<parallel>], iteration_bounds = array<i64: 2, 2>, scalar_prefetch = 0 : i64, scratch_operands = 1 : i64, tpu.core_type = #tpu.core_type<tc>, window_params = [{transform_indices = @transform_0, window_bounds = array<i64: 1, 18, 18, 8>}, {pipeline_mode = #tpu.pipeline_mode<synchronous>, transform_indices = @transform_1, window_bounds = array<i64: 72, 128>}, {transform_indices = @transform_2, window_bounds = array<i64: 1, 1, 128, 128>}, {transform_indices = @transform_3, window_bounds = array<i64: 1, 1, 2, 128>}]} {
    %c8_i32 = arith.constant 8 : i32
    %0 = arith.muli %arg1, %c8_i32 : i32
    %c0_i32 = arith.constant 0 : i32
    %1 = arith.addi %0, %c0_i32 : i32
    %c0 = arith.constant 0 : index
    %2 = arith.index_cast %1 : i32 to index
    %c0_0 = arith.constant 0 : index
    %c0_1 = arith.constant 0 : index
    %3 = vector.load %arg2[%c0, %2, %c0_0, %c0_1] : memref<1x18x18x8xf32, #tpu.memory_space<vmem>>, vector<1x8x16x8xf32>
    %4 = vector.shape_cast %3 : vector<1x8x16x8xf32> to vector<8x16x8xf32>
    %5 = vector.shape_cast %4 : vector<8x16x8xf32> to vector<128x8xf32>
    %c0_2 = arith.constant 0 : index
    %c0_3 = arith.constant 0 : index
    %6 = vector.load %arg6[%c0_2, %c0_3] : memref<128x72xf32, #tpu.memory_space<vmem>>, vector<128x8xf32>
    tpu.vector_store %arg6[%c0_2, %c0_3], %5 {strides = array<i32>} : memref<128x72xf32, #tpu.memory_space<vmem>>, vector<128x8xf32>,
    %c0_i32_4 = arith.constant 0 : i32
    %7 = arith.addi %0, %c0_i32_4 : i32
    %c0_5 = arith.constant 0 : index
    %8 = arith.index_cast %7 : i32 to index
    %c1 = arith.constant 1 : index
    %c0_6 = arith.constant 0 : index
    %9 = vector.load %arg2[%c0_5, %8, %c1, %c0_6] : memref<1x18x18x8xf32, #tpu.memory_space<vmem>>, vector<1x8x16x8xf32>
    %10 = vector.shape_cast %9 : vector<1x8x16x8xf32> to vector<8x16x8xf32>
    %11 = vector.shape_cast %10 : vector<8x16x8xf32> to vector<128x8xf32>
    %c0_7 = arith.constant 0 : index
    %c8 = arith.constant 8 : index
    %12 = vector.load %arg6[%c0_7, %c8] : memref<128x72xf32, #tpu.memory_space<vmem>>, vector<128x8xf32>
    tpu.vector_store %arg6[%c0_7, %c8], %11 {strides = array<i32>} : memref<128x72xf32, #tpu.memory_space<vmem>>, vector<128x8xf32>,
    %c0_i32_8 = arith.constant 0 : i32
    %13 = arith.addi %0, %c0_i32_8 : i32
    %c0_9 = arith.constant 0 : index
    %14 = arith.index_cast %13 : i32 to index
    %c2 = arith.constant 2 : index
    %c0_10 = arith.constant 0 : index
    %15 = vector.load %arg2[%c0_9, %14, %c2, %c0_10] : memref<1x18x18x8xf32, #tpu.memory_space<vmem>>, vector<1x8x16x8xf32>
    %16 = vector.shape_cast %15 : vector<1x8x16x8xf32> to vector<8x16x8xf32>
    %17 = vector.shape_cast %16 : vector<8x16x8xf32> to vector<128x8xf32>
    %c0_11 = arith.constant 0 : index
    %c16 = arith.constant 16 : index
    %18 = vector.load %arg6[%c0_11, %c16] : memref<128x72xf32, #tpu.memory_space<vmem>>, vector<128x8xf32>
    tpu.vector_store %arg6[%c0_11, %c16], %17 {strides = array<i32>} : memref<128x72xf32, #tpu.memory_space<vmem>>, vector<128x8xf32>,
    %c1_i32 = arith.constant 1 : i32
    %19 = arith.addi %0, %c1_i32 : i32
    %c0_12 = arith.constant 0 : index
    %20 = arith.index_cast %19 : i32 to index
    %c0_13 = arith.constant 0 : index
    %c0_14 = arith.constant 0 : index
    %21 = vector.load %arg2[%c0_12, %20, %c0_13, %c0_14] : memref<1x18x18x8xf32, #tpu.memory_space<vmem>>, vector<1x8x16x8xf32>
    %22 = vector.shape_cast %21 : vector<1x8x16x8xf32> to vector<8x16x8xf32>
    %23 = vector.shape_cast %22 : vector<8x16x8xf32> to vector<128x8xf32>
    %c0_15 = arith.constant 0 : index
    %c24 = arith.constant 24 : index
    %24 = vector.load %arg6[%c0_15, %c24] : memref<128x72xf32, #tpu.memory_space<vmem>>, vector<128x8xf32>
    tpu.vector_store %arg6[%c0_15, %c24], %23 {strides = array<i32>} : memref<128x72xf32, #tpu.memory_space<vmem>>, vector<128x8xf32>,
    %c1_i32_16 = arith.constant 1 : i32
    %25 = arith.addi %0, %c1_i32_16 : i32
    %c0_17 = arith.constant 0 : index
    %26 = arith.index_cast %25 : i32 to index
    %c1_18 = arith.constant 1 : index
    %c0_19 = arith.constant 0 : index
    %27 = vector.load %arg2[%c0_17, %26, %c1_18, %c0_19] : memref<1x18x18x8xf32, #tpu.memory_space<vmem>>, vector<1x8x16x8xf32>
    %28 = vector.shape_cast %27 : vector<1x8x16x8xf32> to vector<8x16x8xf32>
    %29 = vector.shape_cast %28 : vector<8x16x8xf32> to vector<128x8xf32>
    %c0_20 = arith.constant 0 : index
    %c32 = arith.constant 32 : index
    %30 = vector.load %arg6[%c0_20, %c32] : memref<128x72xf32, #tpu.memory_space<vmem>>, vector<128x8xf32>
    tpu.vector_store %arg6[%c0_20, %c32], %29 {strides = array<i32>} : memref<128x72xf32, #tpu.memory_space<vmem>>, vector<128x8xf32>,
    %c1_i32_21 = arith.constant 1 : i32
    %31 = arith.addi %0, %c1_i32_21 : i32
    %c0_22 = arith.constant 0 : index
    %32 = arith.index_cast %31 : i32 to index
    %c2_23 = arith.constant 2 : index
    %c0_24 = arith.constant 0 : index
    %33 = vector.load %arg2[%c0_22, %32, %c2_23, %c0_24] : memref<1x18x18x8xf32, #tpu.memory_space<vmem>>, vector<1x8x16x8xf32>
    %34 = vector.shape_cast %33 : vector<1x8x16x8xf32> to vector<8x16x8xf32>
    %35 = vector.shape_cast %34 : vector<8x16x8xf32> to vector<128x8xf32>
    %c0_25 = arith.constant 0 : index
    %c40 = arith.constant 40 : index
    %36 = vector.load %arg6[%c0_25, %c40] : memref<128x72xf32, #tpu.memory_space<vmem>>, vector<128x8xf32>
    tpu.vector_store %arg6[%c0_25, %c40], %35 {strides = array<i32>} : memref<128x72xf32, #tpu.memory_space<vmem>>, vector<128x8xf32>,
    %c2_i32 = arith.constant 2 : i32
    %37 = arith.addi %0, %c2_i32 : i32
    %c0_26 = arith.constant 0 : index
    %38 = arith.index_cast %37 : i32 to index
    %c0_27 = arith.constant 0 : index
    %c0_28 = arith.constant 0 : index
    %39 = vector.load %arg2[%c0_26, %38, %c0_27, %c0_28] : memref<1x18x18x8xf32, #tpu.memory_space<vmem>>, vector<1x8x16x8xf32>
    %40 = vector.shape_cast %39 : vector<1x8x16x8xf32> to vector<8x16x8xf32>
    %41 = vector.shape_cast %40 : vector<8x16x8xf32> to vector<128x8xf32>
    %c0_29 = arith.constant 0 : index
    %c48 = arith.constant 48 : index
    %42 = vector.load %arg6[%c0_29, %c48] : memref<128x72xf32, #tpu.memory_space<vmem>>, vector<128x8xf32>
    tpu.vector_store %arg6[%c0_29, %c48], %41 {strides = array<i32>} : memref<128x72xf32, #tpu.memory_space<vmem>>, vector<128x8xf32>,
    %c2_i32_30 = arith.constant 2 : i32
    %43 = arith.addi %0, %c2_i32_30 : i32
    %c0_31 = arith.constant 0 : index
    %44 = arith.index_cast %43 : i32 to index
    %c1_32 = arith.constant 1 : index
    %c0_33 = arith.constant 0 : index
    %45 = vector.load %arg2[%c0_31, %44, %c1_32, %c0_33] : memref<1x18x18x8xf32, #tpu.memory_space<vmem>>, vector<1x8x16x8xf32>
    %46 = vector.shape_cast %45 : vector<1x8x16x8xf32> to vector<8x16x8xf32>
    %47 = vector.shape_cast %46 : vector<8x16x8xf32> to vector<128x8xf32>
    %c0_34 = arith.constant 0 : index
    %c56 = arith.constant 56 : index
    %48 = vector.load %arg6[%c0_34, %c56] : memref<128x72xf32, #tpu.memory_space<vmem>>, vector<128x8xf32>
    tpu.vector_store %arg6[%c0_34, %c56], %47 {strides = array<i32>} : memref<128x72xf32, #tpu.memory_space<vmem>>, vector<128x8xf32>,
    %c2_i32_35 = arith.constant 2 : i32
    %49 = arith.addi %0, %c2_i32_35 : i32
    %c0_36 = arith.constant 0 : index
    %50 = arith.index_cast %49 : i32 to index
    %c2_37 = arith.constant 2 : index
    %c0_38 = arith.constant 0 : index
    %51 = vector.load %arg2[%c0_36, %50, %c2_37, %c0_38] : memref<1x18x18x8xf32, #tpu.memory_space<vmem>>, vector<1x8x16x8xf32>
    %52 = vector.shape_cast %51 : vector<1x8x16x8xf32> to vector<8x16x8xf32>
    %53 = vector.shape_cast %52 : vector<8x16x8xf32> to vector<128x8xf32>
    %c0_39 = arith.constant 0 : index
    %c64 = arith.constant 64 : index
    %54 = vector.load %arg6[%c0_39, %c64] : memref<128x72xf32, #tpu.memory_space<vmem>>, vector<128x8xf32>
    tpu.vector_store %arg6[%c0_39, %c64], %53 {strides = array<i32>} : memref<128x72xf32, #tpu.memory_space<vmem>>, vector<128x8xf32>,
    %c0_40 = arith.constant 0 : index
    %c0_41 = arith.constant 0 : index
    %55 = vector.load %arg6[%c0_40, %c0_41] : memref<128x72xf32, #tpu.memory_space<vmem>>, vector<128x72xf32>
    %c0_42 = arith.constant 0 : index
    %c0_43 = arith.constant 0 : index
    %56 = vector.load %arg3[%c0_42, %c0_43] : memref<72x128xf32, #tpu.memory_space<vmem>>, vector<72x128xf32>
    %cst = arith.constant dense<0.000000e+00> : vector<128x128xf32>
    %57 = tpu.matmul %55, %56, %cst {dimension_numbers = #tpu.dot_dimension_numbers<[1], [0], [0], [1], [0, 0, 1, 1], [], []>} : vector<128x72xf32>, vector<72x128xf32>, vector<128x128xf32> -> vector<128x128xf32>
    %c0_44 = arith.constant 0 : index
    %c0_45 = arith.constant 0 : index
    %c0_46 = arith.constant 0 : index
    %c0_47 = arith.constant 0 : index
    %58 = vector.load %arg4[%c0_44, %c0_45, %c0_46, %c0_47] : memref<1x1x128x128xf32, #tpu.memory_space<vmem>>, vector<1x1x128x128xf32>
    %59 = vector.shape_cast %58 : vector<1x1x128x128xf32> to vector<128x128xf32>
    %60 = vector.shape_cast %57 : vector<128x128xf32> to vector<1x1x128x128xf32>
    tpu.vector_store %arg4[%c0_44, %c0_45, %c0_46, %c0_47], %60 {strides = array<i32>} : memref<1x1x128x128xf32, #tpu.memory_space<vmem>>, vector<1x1x128x128xf32>,
    %cst_48 = arith.constant dense<0.000000e+00> : vector<128xf32>
    %61 = vector.multi_reduction <add>, %57, %cst_48 [0] : vector<128x128xf32> to vector<128xf32>
    %62 = vector.shape_cast %61 : vector<128xf32> to vector<1x128xf32>
    %c0_49 = arith.constant 0 : index
    %c0_50 = arith.constant 0 : index
    %c0_51 = arith.constant 0 : index
    %c0_52 = arith.constant 0 : index
    %63 = vector.load %arg5[%c0_49, %c0_50, %c0_51, %c0_52] : memref<1x1x2x128xf32, #tpu.memory_space<vmem>>, vector<1x1x1x128xf32>
    %64 = vector.shape_cast %63 : vector<1x1x1x128xf32> to vector<1x128xf32>
    %65 = vector.shape_cast %62 : vector<1x128xf32> to vector<1x1x1x128xf32>
    tpu.vector_store %arg5[%c0_49, %c0_50, %c0_51, %c0_52], %65 {strides = array<i32>} : memref<1x1x2x128xf32, #tpu.memory_space<vmem>>, vector<1x1x1x128xf32>,
    %66 = arith.mulf %57, %57 : vector<128x128xf32>
    %cst_53 = arith.constant dense<0.000000e+00> : vector<128xf32>
    %67 = vector.multi_reduction <add>, %66, %cst_53 [0] : vector<128x128xf32> to vector<128xf32>
    %68 = vector.shape_cast %67 : vector<128xf32> to vector<1x128xf32>
    %c0_54 = arith.constant 0 : index
    %c0_55 = arith.constant 0 : index
    %c1_56 = arith.constant 1 : index
    %c0_57 = arith.constant 0 : index
    %69 = vector.load %arg5[%c0_54, %c0_55, %c1_56, %c0_57] : memref<1x1x2x128xf32, #tpu.memory_space<vmem>>, vector<1x1x1x128xf32>
    %70 = vector.shape_cast %69 : vector<1x1x1x128xf32> to vector<1x128xf32>
    %71 = vector.shape_cast %68 : vector<1x128xf32> to vector<1x1x1x128xf32>
    tpu.vector_store %arg5[%c0_54, %c0_55, %c1_56, %c0_57], %71 {strides = array<i32>} : memref<1x1x2x128xf32, #tpu.memory_space<vmem>>, vector<1x1x1x128xf32>,
    return
  }
  func.func @transform_0(%arg0: i32, %arg1: i32) -> (i32, i32, i32, i32) {
    %c0_i32 = arith.constant 0 : i32
    %c0_i32_0 = arith.constant 0 : i32
    %c0_i32_1 = arith.constant 0 : i32
    %c0_i32_2 = arith.constant 0 : i32
    return %arg0, %c0_i32, %c0_i32_0, %c0_i32_1 : i32, i32, i32, i32
  }
  func.func @transform_1(%arg0: i32, %arg1: i32) -> (i32, i32) {
    %c0_i32 = arith.constant 0 : i32
    %c0_i32_0 = arith.constant 0 : i32
    %c0_i32_1 = arith.constant 0 : i32
    return %c0_i32, %c0_i32_0 : i32, i32
  }
  func.func @transform_2(%arg0: i32, %arg1: i32) -> (i32, i32, i32, i32) {
    %c0_i32 = arith.constant 0 : i32
    %c0_i32_0 = arith.constant 0 : i32
    %c0_i32_1 = arith.constant 0 : i32
    return %arg0, %arg1, %c0_i32, %c0_i32_0 : i32, i32, i32, i32
  }
  func.func @transform_3(%arg0: i32, %arg1: i32) -> (i32, i32, i32, i32) {
    %c0_i32 = arith.constant 0 : i32
    %c0_i32_0 = arith.constant 0 : i32
    %c0_i32_1 = arith.constant 0 : i32
    return %arg0, %arg1, %c0_i32, %c0_i32_0 : i32, i32, i32, i32
  }
}

</mosaic_0001>

<llo_original>
// kernel: tpu_custom_call.1
$region0: #{tpu_custom_call.1}
  #allocation0 [shape = 'u32[]', space=smem, size = 0x4, offset = 0x4, fixed_abs, tag = 'smem constant byte address 0x4 - core index']
  #allocation1 [shape = 'u32[144,128]{1,0:T(1,128)}', space=vmem, size = 0x12000, scoped, tag = 'internal scratch']
  #allocation2 [shape = 'f32[128,72]{1,0:T(8,128)}', space=vmem, size = 0x10000, scoped, tag = 'scratch operand']
  %s0 = inlined_call_operand.vmem [shape: f32[2,18,18,8], index: 0, kind: input, shape index: {}]
  %s1 = inlined_call_operand.vmem [shape: f32[72,128], index: 1, kind: input, shape index: {}]
  %s2 = inlined_call_operand.hbm [shape: f32[2,2,128,128], index: 2, kind: output, shape index: {0}]
  %s3 = inlined_call_operand.hbm [shape: f32[2,2,2,128], index: 3, kind: output, shape index: {1}]
  %4 = xla_tuple %s2, %s3
  %s5 = sld [smem:[#allocation0]]
  $region49: #{tpu_custom_call.1} parent=0
    _
  %s7 = ssub.s32 1, %s5
  %s8 = scalar_select 0, %s7, %s5
  $region1: #{tpu_custom_call.1} parent=0
    #allocation3 [shape = 'u8[131072]{0}', space=vmem, size = 0x20000, scoped, tag = 'output window, operand 0']
    #allocation4 [shape = 's32[2]{0}', space=sflag, size = 0x8, scoped, tag = 'scoped memory for tpu_custom_call.1']
    #allocation5 [shape = 'u8[2048]{0}', space=vmem, size = 0x800, scoped, tag = 'output window, operand 1']
    #allocation6 [shape = 's32[2]{0}', space=sflag, size = 0x8, scoped, tag = 'scoped memory for tpu_custom_call.1']
    %9 = vsyncpa [#allocation4], 0
    %s10 = scalar_lea.sflag [#allocation4], 1
    %11 = vsyncpa %s10, 0
    %12 = vsyncpa [#allocation6], 0
    %s13 = scalar_lea.sflag [#allocation6], 1
    %14 = vsyncpa %s13, 0
    loop: start=0, step=1, limit=6
    $region2: #{tpu_custom_call.1} parent=1 // loop_pre_header
      _
    $region3: #{tpu_custom_call.1} parent=1 // loop_header
      %s16 = sphi 0, %s20
      %p17 = scmp.ge.s32.totalorder %s16, 6
      %s23 = sphi 0, %s35
      %s24 = sphi 0, %s31
      %s25 = sphi 0, %s23
      %s26 = sphi 0, %s24
      %s27 = sphi 0, %s25
      %s28 = sphi 0, %s26
      %s38 = sphi 0, %s40
      %s41 = sphi 0, %s38
      %s42 = sphi 0, %s41
      %s58 = sphi 0, %s42
      %s62 = sphi 0, %s62
      %s64 = sphi 0, %s62
      %s65 = sphi 0, %s64
      %s79 = sphi 0, %s65
      %s87 = sphi 0, %s89
      %s90 = sphi 0, %s87
      %s91 = sphi 0, %s90
      %s107 = sphi 0, %s91
      %s115 = sphi 0, %s117
      %s118 = sphi 0, %s115
      %s119 = sphi 0, %s118
      %s135 = sphi 0, %s119
    $region4: #{tpu_custom_call.1} parent=1 // loop_header_branch
      %19 = sbr.rel (%p17) target = $region8
    $region5: #{tpu_custom_call.1} parent=1 // loop_body
      %s21 = ssub.s32 %s16, 1
      %s22 = ssub.s32 %s16, 2
      %s29 = sadd.s32 1, %s24
      %p30 = scmp.ge.s32.totalorder %s29, 2
      %s31 = scalar_select %p30, 0, %s29
      %s32 = sadd.s32 1, %s23
      %s33 = scalar_select %p30, %s32, %s23
      %p34 = scmp.ge.s32.totalorder %s33, 2
      %s35 = scalar_select %p34, 0, %s33
      %s36 = ssub.s32 %s23, %s35
      %p37 = scmp.eq.s32.totalorder %s36, 0
      %s39 = sadd.s32 %s38, 1
      %s40 = scalar_select %p37, %s38, %s39
      %p43 = pneg %p37
      %p44 = scmp.eq.s32.totalorder %s16, 3
      %p45 = por %p43, %p44
      %p46 = scmp.ne.s32.totalorder %s38, %s41
      %p47 = scmp.eq.s32.totalorder %s16, 0
      %p48 = por %p46, %p47
      %p49 = scmp.ne.s32.totalorder %s38, %s41
      %p50 = scmp.eq.s32.totalorder %s21, 3
      %p51 = por %p49, %p50
      %p52 = scmp.ne.s32.totalorder %s41, %s42
      %p53 = scmp.eq.s32.totalorder %s21, 0
      %p54 = por %p52, %p53
      %p55 = scmp.ne.s32.totalorder %s41, %s42
      %p56 = scmp.eq.s32.totalorder %s22, 3
      %p57 = por %p55, %p56
      %p59 = scmp.ne.s32.totalorder %s42, %s58
      %p60 = scmp.eq.s32.totalorder %s22, 0
      %p61 = por %p59, %p60
      %s63 = sadd.s32 %s62, 1
      %p66 = scmp.eq.s32.totalorder %s16, 3
      %p67 = scmp.ne.s32.totalorder %s62, %s64
      %p68 = scmp.eq.s32.totalorder %s16, 0
      %p69 = por %p67, %p68
      %p70 = scmp.ne.s32.totalorder %s62, %s64
      %p71 = scmp.eq.s32.totalorder %s21, 3
      %p72 = por %p70, %p71
      %p73 = scmp.ne.s32.totalorder %s64, %s65
      %p74 = scmp.eq.s32.totalorder %s21, 0
      %p75 = por %p73, %p74
      %p76 = scmp.ne.s32.totalorder %s64, %s65
      %p77 = scmp.eq.s32.totalorder %s22, 3
      %p78 = por %p76, %p77
      %p80 = scmp.ne.s32.totalorder %s65, %s79
      %p81 = scmp.eq.s32.totalorder %s22, 0
      %p82 = por %p80, %p81
      %s83 = ssub.s32 %s23, %s35
      %s84 = ssub.s32 %s24, %s31
      %s85 = sor.u32 %s83, %s84
      %p86 = scmp.eq.s32.totalorder %s85, 0
      %s88 = sadd.s32 %s87, 1
      %s89 = scalar_select %p86, %s87, %s88
      %p92 = pneg %p86
      %p93 = scmp.eq.s32.totalorder %s16, 3
      %p94 = por %p92, %p93
      %p95 = scmp.ne.s32.totalorder %s87, %s90
      %p96 = scmp.eq.s32.totalorder %s16, 0
      %p97 = por %p95, %p96
      %p98 = scmp.ne.s32.totalorder %s87, %s90
      %p99 = scmp.eq.s32.totalorder %s21, 3
      %p100 = por %p98, %p99
      %p101 = scmp.ne.s32.totalorder %s90, %s91
      %p102 = scmp.eq.s32.totalorder %s21, 0
      %p103 = por %p101, %p102
      %p104 = scmp.ne.s32.totalorder %s90, %s91
      %p105 = scmp.eq.s32.totalorder %s22, 3
      %p106 = por %p104, %p105
      %p108 = scmp.ne.s32.totalorder %s91, %s107
      %p109 = scmp.eq.s32.totalorder %s22, 0
      %p110 = por %p108, %p109
      %s111 = ssub.s32 %s23, %s35
      %s112 = ssub.s32 %s24, %s31
      %s113 = sor.u32 %s111, %s112
      %p114 = scmp.eq.s32.totalorder %s113, 0
      %s116 = sadd.s32 %s115, 1
      %s117 = scalar_select %p114, %s115, %s116
      %p120 = pneg %p114
      %p121 = scmp.eq.s32.totalorder %s16, 3
      %p122 = por %p120, %p121
      %p123 = scmp.ne.s32.totalorder %s115, %s118
      %p124 = scmp.eq.s32.totalorder %s16, 0
      %p125 = por %p123, %p124
      %p126 = scmp.ne.s32.totalorder %s115, %s118
      %p127 = scmp.eq.s32.totalorder %s21, 3
      %p128 = por %p126, %p127
      %p129 = scmp.ne.s32.totalorder %s118, %s119
      %p130 = scmp.eq.s32.totalorder %s21, 0
      %p131 = por %p129, %p130
      %p132 = scmp.ne.s32.totalorder %s118, %s119
      %p133 = scmp.eq.s32.totalorder %s22, 3
      %p134 = por %p132, %p133
      %p136 = scmp.ne.s32.totalorder %s119, %s135
      %p137 = scmp.eq.s32.totalorder %s22, 0
      %p138 = por %p136, %p137
      %p139 = scmp.le.s32.totalorder 1, %s16
      %p140 = scmp.lt.s32.totalorder %s16, 5
      %p141 = pnand %p139, %p140
      %p142 = pneg %p141
      // Predicated region
      $region9: #{tpu_custom_call.1} parent=5 // pred_check
        _
      $region10: #{tpu_custom_call.1} parent=5 // pred_check_branch
        %144 = sbr.rel (%p141) target = $region12
      $region11: #{tpu_custom_call.1} parent=5 // pred_region
        %s145 = ssub.s32 %s16, 1
        // Predicated region
        $region13: #{tpu_custom_call.1} parent=11 // pred_check
          %p146 = pneg %p75
        $region14: #{tpu_custom_call.1} parent=11 // pred_check_branch
          %148 = sbr.rel (%p146) target = $region16
        $region15: #{tpu_custom_call.1} parent=11 // pred_region
          _
        $region16: #{tpu_custom_call.1} parent=11 // pred_fallthru
          _
      $region12: #{tpu_custom_call.1} parent=5 // pred_fallthru
        _
      %p149 = scmp.lt.s32.totalorder %s16, 4
      // Predicated region
      $region17: #{tpu_custom_call.1} parent=5 // pred_check
        %p150 = pneg %p149
      $region18: #{tpu_custom_call.1} parent=5 // pred_check_branch
        %152 = sbr.rel (%p150) target = $region20
      $region19: #{tpu_custom_call.1} parent=5 // pred_region
        // Predicated region
        $region21: #{tpu_custom_call.1} parent=19 // pred_check
          %p153 = pneg %p48
        $region22: #{tpu_custom_call.1} parent=19 // pred_check_branch
          %155 = sbr.rel (%p153) target = $region24
        $region23: #{tpu_custom_call.1} parent=19 // pred_region
          %p156 = scmp.lt.s32.totalorder %s23, 1
          %s157 = scalar_select %p156, %s23, 1
          %s158 = smul.addr %s157, 54
          %s159 = smul.addr %s158, 8
          %s160 = scalar_lea.vmem %s0, %s159
        $region24: #{tpu_custom_call.1} parent=19 // pred_fallthru
          _
      $region20: #{tpu_custom_call.1} parent=5 // pred_fallthru
        _
      %p161 = scmp.le.s32.totalorder 1, %s16
      %p162 = scmp.lt.s32.totalorder %s16, 5
      %p163 = pnand %p161, %p162
      %p164 = pneg %p163
      // Predicated region
      $region25: #{tpu_custom_call.1} parent=5 // pred_check
        _
      $region26: #{tpu_custom_call.1} parent=5 // pred_check_branch
        %166 = sbr.rel (%p163) target = $region28
      $region27: #{tpu_custom_call.1} parent=5 // pred_region
        %s167 = ssub.s32 %s16, 1
        %p168 = scmp.lt.s32.totalorder %s25, 1
        %s169 = scalar_select %p168, %s25, 1
        %s170 = smul.addr %s169, 54
        %s171 = smul.addr %s170, 8
        %s172 = scalar_lea.vmem %s0, %s171
        %p173 = pneg %p54
        %p174 = pneg %p51
        %p175 = pneg %p75
        %p176 = pneg %p72
        %p177 = pneg %p103
        %p178 = pneg %p100
        %s179 = sand.u32 %s90, 1
        %s180 = scalar_lea.sflag [#allocation4], %s179
        %s181 = sand.u32 %s90, 1
        %s182 = smul.addr %s181, 128
        %s183 = scalar_lea.vmem [#allocation3], %s182
        %p184 = pneg %p131
        %p185 = pneg %p128
        %s186 = sand.u32 %s118, 1
        %s187 = scalar_lea.sflag [#allocation6], %s186
        %s188 = sand.u32 %s118, 1
        %s189 = smul.addr %s188, 2
        %s190 = scalar_lea.vmem [#allocation5], %s189
        %p191 = scmp.lt.s32.totalorder %s25, 1
        %s192 = scalar_select %p191, %s25, 1
        %s193 = smul.addr %s192, 54
        %s194 = smul.addr %s193, 8
        %s195 = scalar_lea.vmem %s0, %s194
        %s196 = smul.u32 %s26, 8
        %s197 = smul.u32 %s196, 24
        %s198 = scalar_lea.vmem %s195, %s197
        %v199 = vld [vmem:[%s198] sm:$0xff]
        %v200 = vld [vmem:[%s198 + $0x8] sm:$0xff]
        %v201 = vld [vmem:[%s198 + $0x18] sm:$0xff]
        %v202 = vld [vmem:[%s198 + $0x20] sm:$0xff]
        %v203 = vld [vmem:[%s198 + $0x30] sm:$0xff]
        %v204 = vld [vmem:[%s198 + $0x38] sm:$0xff]
        %v205 = vld [vmem:[%s198 + $0x48] sm:$0xff]
        %v206 = vld [vmem:[%s198 + $0x50] sm:$0xff]
        %v207 = vld [vmem:[%s198 + $0x60] sm:$0xff]
        %v208 = vld [vmem:[%s198 + $0x68] sm:$0xff]
        %v209 = vld [vmem:[%s198 + $0x78] sm:$0xff]
        %v210 = vld [vmem:[%s198 + $0x80] sm:$0xff]
        %v211 = vld [vmem:[%s198 + $0x90] sm:$0xff]
        %v212 = vld [vmem:[%s198 + $0x98] sm:$0xff]
        %v213 = vld [vmem:[%s198 + $0xa8] sm:$0xff]
        %v214 = vld [vmem:[%s198 + $0xb0] sm:$0xff]
        %vm215 = vcmask 64512
        %216 = vst.msk [vmem:[#allocation2] sm:$0xff] %vm215, %v199
        %217 = vst.msk [vmem:[#allocation2 + $0x8] sm:$0xff] %vm215, %v200
        %218 = vst.msk [vmem:[#allocation2 + $0x10] sm:$0xff] %vm215, %v201
        %219 = vst.msk [vmem:[#allocation2 + $0x18] sm:$0xff] %vm215, %v202
        %220 = vst.msk [vmem:[#allocation2 + $0x20] sm:$0xff] %vm215, %v203
        %221 = vst.msk [vmem:[#allocation2 + $0x28] sm:$0xff] %vm215, %v204
        %222 = vst.msk [vmem:[#allocation2 + $0x30] sm:$0xff] %vm215, %v205
        %223 = vst.msk [vmem:[#allocation2 + $0x38] sm:$0xff] %vm215, %v206
        %224 = vst.msk [vmem:[#allocation2 + $0x40] sm:$0xff] %vm215, %v207
        %225 = vst.msk [vmem:[#allocation2 + $0x48] sm:$0xff] %vm215, %v208
        %226 = vst.msk [vmem:[#allocation2 + $0x50] sm:$0xff] %vm215, %v209
        %227 = vst.msk [vmem:[#allocation2 + $0x58] sm:$0xff] %vm215, %v210
        %228 = vst.msk [vmem:[#allocation2 + $0x60] sm:$0xff] %vm215, %v211
        %229 = vst.msk [vmem:[#allocation2 + $0x68] sm:$0xff] %vm215, %v212
        %230 = vst.msk [vmem:[#allocation2 + $0x70] sm:$0xff] %vm215, %v213
        %231 = vst.msk [vmem:[#allocation2 + $0x78] sm:$0xff] %vm215, %v214
        %v232 = vld [vmem:[%s198 + $0x1] sm:$0xff]
        %v233 = vld [vmem:[%s198 + $0x9] sm:$0xff]
        %v234 = vld [vmem:[%s198 + $0x19] sm:$0xff]
        %v235 = vld [vmem:[%s198 + $0x21] sm:$0xff]
        %v236 = vld [vmem:[%s198 + $0x31] sm:$0xff]
        %v237 = vld [vmem:[%s198 + $0x39] sm:$0xff]
        %v238 = vld [vmem:[%s198 + $0x49] sm:$0xff]
        %v239 = vld [vmem:[%s198 + $0x51] sm:$0xff]
        %v240 = vld [vmem:[%s198 + $0x61] sm:$0xff]
        %v241 = vld [vmem:[%s198 + $0x69] sm:$0xff]
        %v242 = vld [vmem:[%s198 + $0x79] sm:$0xff]
        %v243 = vld [vmem:[%s198 + $0x81] sm:$0xff]
        %v244 = vld [vmem:[%s198 + $0x91] sm:$0xff]
        %v245 = vld [vmem:[%s198 + $0x99] sm:$0xff]
        %v246 = vld [vmem:[%s198 + $0xa9] sm:$0xff]
        %v247 = vld [vmem:[%s198 + $0xb1] sm:$0xff]
        %264 = vrot.lane.b32.xlu0 %v232, 8
        %v265 = vpop.permute.xlu0 %264
        %266 = vrot.lane.b32.xlu0 %v233, 8
        %v267 = vpop.permute.xlu0 %266
        %268 = vrot.lane.b32.xlu0 %v234, 8
        %v269 = vpop.permute.xlu0 %268
        %270 = vrot.lane.b32.xlu0 %v235, 8
        %v271 = vpop.permute.xlu0 %270
        %272 = vrot.lane.b32.xlu0 %v236, 8
        %v273 = vpop.permute.xlu0 %272
        %274 = vrot.lane.b32.xlu0 %v237, 8
        %v275 = vpop.permute.xlu0 %274
        %276 = vrot.lane.b32.xlu0 %v238, 8
        %v277 = vpop.permute.xlu0 %276
        %278 = vrot.lane.b32.xlu0 %v239, 8
        %v279 = vpop.permute.xlu0 %278
        %280 = vrot.lane.b32.xlu0 %v240, 8
        %v281 = vpop.permute.xlu0 %280
        %282 = vrot.lane.b32.xlu0 %v241, 8
        %v283 = vpop.permute.xlu0 %282
        %284 = vrot.lane.b32.xlu0 %v242, 8
        %v285 = vpop.permute.xlu0 %284
        %286 = vrot.lane.b32.xlu0 %v243, 8
        %v287 = vpop.permute.xlu0 %286
        %288 = vrot.lane.b32.xlu0 %v244, 8
        %v289 = vpop.permute.xlu0 %288
        %290 = vrot.lane.b32.xlu0 %v245, 8
        %v291 = vpop.permute.xlu0 %290
        %292 = vrot.lane.b32.xlu0 %v246, 8
        %v293 = vpop.permute.xlu0 %292
        %294 = vrot.lane.b32.xlu0 %v247, 8
        %v295 = vpop.permute.xlu0 %294
        %vm312 = vcmask 130112
        %313 = vst.msk [vmem:[#allocation2] sm:$0xff] %vm312, %v265
        %314 = vst.msk [vmem:[#allocation2 + $0x8] sm:$0xff] %vm312, %v267
        %315 = vst.msk [vmem:[#allocation2 + $0x10] sm:$0xff] %vm312, %v269
        %316 = vst.msk [vmem:[#allocation2 + $0x18] sm:$0xff] %vm312, %v271
        %317 = vst.msk [vmem:[#allocation2 + $0x20] sm:$0xff] %vm312, %v273
        %318 = vst.msk [vmem:[#allocation2 + $0x28] sm:$0xff] %vm312, %v275
        %319 = vst.msk [vmem:[#allocation2 + $0x30] sm:$0xff] %vm312, %v277
        %320 = vst.msk [vmem:[#allocation2 + $0x38] sm:$0xff] %vm312, %v279
        %321 = vst.msk [vmem:[#allocation2 + $0x40] sm:$0xff] %vm312, %v281
        %322 = vst.msk [vmem:[#allocation2 + $0x48] sm:$0xff] %vm312, %v283
        %323 = vst.msk [vmem:[#allocation2 + $0x50] sm:$0xff] %vm312, %v285
        %324 = vst.msk [vmem:[#allocation2 + $0x58] sm:$0xff] %vm312, %v287
        %325 = vst.msk [vmem:[#allocation2 + $0x60] sm:$0xff] %vm312, %v289
        %326 = vst.msk [vmem:[#allocation2 + $0x68] sm:$0xff] %vm312, %v291
        %327 = vst.msk [vmem:[#allocation2 + $0x70] sm:$0xff] %vm312, %v293
        %328 = vst.msk [vmem:[#allocation2 + $0x78] sm:$0xff] %vm312, %v295
        %v329 = vld [vmem:[%s198 + $0x2] sm:$0xff]
        %v330 = vld [vmem:[%s198 + $0xa] sm:$0xff]
        %v331 = vld [vmem:[%s198 + $0x1a] sm:$0xff]
        %v332 = vld [vmem:[%s198 + $0x22] sm:$0xff]
        %v333 = vld [vmem:[%s198 + $0x32] sm:$0xff]
        %v334 = vld [vmem:[%s198 + $0x3a] sm:$0xff]
        %v335 = vld [vmem:[%s198 + $0x4a] sm:$0xff]
        %v336 = vld [vmem:[%s198 + $0x52] sm:$0xff]
        %v337 = vld [vmem:[%s198 + $0x62] sm:$0xff]
        %v338 = vld [vmem:[%s198 + $0x6a] sm:$0xff]
        %v339 = vld [vmem:[%s198 + $0x7a] sm:$0xff]
        %v340 = vld [vmem:[%s198 + $0x82] sm:$0xff]
        %v341 = vld [vmem:[%s198 + $0x92] sm:$0xff]
        %v342 = vld [vmem:[%s198 + $0x9a] sm:$0xff]
        %v343 = vld [vmem:[%s198 + $0xaa] sm:$0xff]
        %v344 = vld [vmem:[%s198 + $0xb2] sm:$0xff]
        %361 = vrot.lane.b32.xlu0 %v329, 16
        %v362 = vpop.permute.xlu0 %361
        %363 = vrot.lane.b32.xlu0 %v330, 16
        %v364 = vpop.permute.xlu0 %363
        %365 = vrot.lane.b32.xlu0 %v331, 16
        %v366 = vpop.permute.xlu0 %365
        %367 = vrot.lane.b32.xlu0 %v332, 16
        %v368 = vpop.permute.xlu0 %367
        %369 = vrot.lane.b32.xlu0 %v333, 16
        %v370 = vpop.permute.xlu0 %369
        %371 = vrot.lane.b32.xlu0 %v334, 16
        %v372 = vpop.permute.xlu0 %371
        %373 = vrot.lane.b32.xlu0 %v335, 16
        %v374 = vpop.permute.xlu0 %373
        %375 = vrot.lane.b32.xlu0 %v336, 16
        %v376 = vpop.permute.xlu0 %375
        %377 = vrot.lane.b32.xlu0 %v337, 16
        %v378 = vpop.permute.xlu0 %377
        %379 = vrot.lane.b32.xlu0 %v338, 16
        %v380 = vpop.permute.xlu0 %379
        %381 = vrot.lane.b32.xlu0 %v339, 16
        %v382 = vpop.permute.xlu0 %381
        %383 = vrot.lane.b32.xlu0 %v340, 16
        %v384 = vpop.permute.xlu0 %383
        %385 = vrot.lane.b32.xlu0 %v341, 16
        %v386 = vpop.permute.xlu0 %385
        %387 = vrot.lane.b32.xlu0 %v342, 16
        %v388 = vpop.permute.xlu0 %387
        %389 = vrot.lane.b32.xlu0 %v343, 16
        %v390 = vpop.permute.xlu0 %389
        %391 = vrot.lane.b32.xlu0 %v344, 16
        %v392 = vpop.permute.xlu0 %391
        %vm409 = vcmask 195712
        %410 = vst.msk [vmem:[#allocation2] sm:$0xff] %vm409, %v362
        %411 = vst.msk [vmem:[#allocation2 + $0x8] sm:$0xff] %vm409, %v364
        %412 = vst.msk [vmem:[#allocation2 + $0x10] sm:$0xff] %vm409, %v366
        %413 = vst.msk [vmem:[#allocation2 + $0x18] sm:$0xff] %vm409, %v368
        %414 = vst.msk [vmem:[#allocation2 + $0x20] sm:$0xff] %vm409, %v370
        %415 = vst.msk [vmem:[#allocation2 + $0x28] sm:$0xff] %vm409, %v372
        %416 = vst.msk [vmem:[#allocation2 + $0x30] sm:$0xff] %vm409, %v374
        %417 = vst.msk [vmem:[#allocation2 + $0x38] sm:$0xff] %vm409, %v376
        %418 = vst.msk [vmem:[#allocation2 + $0x40] sm:$0xff] %vm409, %v378
        %419 = vst.msk [vmem:[#allocation2 + $0x48] sm:$0xff] %vm409, %v380
        %420 = vst.msk [vmem:[#allocation2 + $0x50] sm:$0xff] %vm409, %v382
        %421 = vst.msk [vmem:[#allocation2 + $0x58] sm:$0xff] %vm409, %v384
        %422 = vst.msk [vmem:[#allocation2 + $0x60] sm:$0xff] %vm409, %v386
        %423 = vst.msk [vmem:[#allocation2 + $0x68] sm:$0xff] %vm409, %v388
        %424 = vst.msk [vmem:[#allocation2 + $0x70] sm:$0xff] %vm409, %v390
        %425 = vst.msk [vmem:[#allocation2 + $0x78] sm:$0xff] %vm409, %v392
        %s426 = sadd.s32 %s196, 1
        %s427 = smul.u32 %s426, 24
        %s428 = scalar_lea.vmem %s195, %s427
        %v429 = vld [vmem:[%s428] sm:$0xff]
        %v430 = vld [vmem:[%s428 + $0x8] sm:$0xff]
        %v431 = vld [vmem:[%s428 + $0x18] sm:$0xff]
        %v432 = vld [vmem:[%s428 + $0x20] sm:$0xff]
        %v433 = vld [vmem:[%s428 + $0x30] sm:$0xff]
        %v434 = vld [vmem:[%s428 + $0x38] sm:$0xff]
        %v435 = vld [vmem:[%s428 + $0x48] sm:$0xff]
        %v436 = vld [vmem:[%s428 + $0x50] sm:$0xff]
        %v437 = vld [vmem:[%s428 + $0x60] sm:$0xff]
        %v438 = vld [vmem:[%s428 + $0x68] sm:$0xff]
        %v439 = vld [vmem:[%s428 + $0x78] sm:$0xff]
        %v440 = vld [vmem:[%s428 + $0x80] sm:$0xff]
        %v441 = vld [vmem:[%s428 + $0x90] sm:$0xff]
        %v442 = vld [vmem:[%s428 + $0x98] sm:$0xff]
        %v443 = vld [vmem:[%s428 + $0xa8] sm:$0xff]
        %v444 = vld [vmem:[%s428 + $0xb0] sm:$0xff]
        %461 = vrot.lane.b32.xlu0 %v429, 24
        %v462 = vpop.permute.xlu0 %461
        %463 = vrot.lane.b32.xlu0 %v430, 24
        %v464 = vpop.permute.xlu0 %463
        %465 = vrot.lane.b32.xlu0 %v431, 24
        %v466 = vpop.permute.xlu0 %465
        %467 = vrot.lane.b32.xlu0 %v432, 24
        %v468 = vpop.permute.xlu0 %467
        %469 = vrot.lane.b32.xlu0 %v433, 24
        %v470 = vpop.permute.xlu0 %469
        %471 = vrot.lane.b32.xlu0 %v434, 24
        %v472 = vpop.permute.xlu0 %471
        %473 = vrot.lane.b32.xlu0 %v435, 24
        %v474 = vpop.permute.xlu0 %473
        %475 = vrot.lane.b32.xlu0 %v436, 24
        %v476 = vpop.permute.xlu0 %475
        %477 = vrot.lane.b32.xlu0 %v437, 24
        %v478 = vpop.permute.xlu0 %477
        %479 = vrot.lane.b32.xlu0 %v438, 24
        %v480 = vpop.permute.xlu0 %479
        %481 = vrot.lane.b32.xlu0 %v439, 24
        %v482 = vpop.permute.xlu0 %481
        %483 = vrot.lane.b32.xlu0 %v440, 24
        %v484 = vpop.permute.xlu0 %483
        %485 = vrot.lane.b32.xlu0 %v441, 24
        %v486 = vpop.permute.xlu0 %485
        %487 = vrot.lane.b32.xlu0 %v442, 24
        %v488 = vpop.permute.xlu0 %487
        %489 = vrot.lane.b32.xlu0 %v443, 24
        %v490 = vpop.permute.xlu0 %489
        %491 = vrot.lane.b32.xlu0 %v444, 24
        %v492 = vpop.permute.xlu0 %491
        %vm509 = vcmask 261312
        %510 = vst.msk [vmem:[#allocation2] sm:$0xff] %vm509, %v462
        %511 = vst.msk [vmem:[#allocation2 + $0x8] sm:$0xff] %vm509, %v464
        %512 = vst.msk [vmem:[#allocation2 + $0x10] sm:$0xff] %vm509, %v466
        %513 = vst.msk [vmem:[#allocation2 + $0x18] sm:$0xff] %vm509, %v468
        %514 = vst.msk [vmem:[#allocation2 + $0x20] sm:$0xff] %vm509, %v470
        %515 = vst.msk [vmem:[#allocation2 + $0x28] sm:$0xff] %vm509, %v472
        %516 = vst.msk [vmem:[#allocation2 + $0x30] sm:$0xff] %vm509, %v474
        %517 = vst.msk [vmem:[#allocation2 + $0x38] sm:$0xff] %vm509, %v476
        %518 = vst.msk [vmem:[#allocation2 + $0x40] sm:$0xff] %vm509, %v478
        %519 = vst.msk [vmem:[#allocation2 + $0x48] sm:$0xff] %vm509, %v480
        %520 = vst.msk [vmem:[#allocation2 + $0x50] sm:$0xff] %vm509, %v482
        %521 = vst.msk [vmem:[#allocation2 + $0x58] sm:$0xff] %vm509, %v484
        %522 = vst.msk [vmem:[#allocation2 + $0x60] sm:$0xff] %vm509, %v486
        %523 = vst.msk [vmem:[#allocation2 + $0x68] sm:$0xff] %vm509, %v488
        %524 = vst.msk [vmem:[#allocation2 + $0x70] sm:$0xff] %vm509, %v490
        %525 = vst.msk [vmem:[#allocation2 + $0x78] sm:$0xff] %vm509, %v492
        %v526 = vld [vmem:[%s428 + $0x1] sm:$0xff]
        %v527 = vld [vmem:[%s428 + $0x9] sm:$0xff]
        %v528 = vld [vmem:[%s428 + $0x19] sm:$0xff]
        %v529 = vld [vmem:[%s428 + $0x21] sm:$0xff]
        %v530 = vld [vmem:[%s428 + $0x31] sm:$0xff]
        %v531 = vld [vmem:[%s428 + $0x39] sm:$0xff]
        %v532 = vld [vmem:[%s428 + $0x49] sm:$0xff]
        %v533 = vld [vmem:[%s428 + $0x51] sm:$0xff]
        %v534 = vld [vmem:[%s428 + $0x61] sm:$0xff]
        %v535 = vld [vmem:[%s428 + $0x69] sm:$0xff]
        %v536 = vld [vmem:[%s428 + $0x79] sm:$0xff]
        %v537 = vld [vmem:[%s428 + $0x81] sm:$0xff]
        %v538 = vld [vmem:[%s428 + $0x91] sm:$0xff]
        %v539 = vld [vmem:[%s428 + $0x99] sm:$0xff]
        %v540 = vld [vmem:[%s428 + $0xa9] sm:$0xff]
        %v541 = vld [vmem:[%s428 + $0xb1] sm:$0xff]
        %558 = vrot.lane.b32.xlu0 %v526, 32
        %v559 = vpop.permute.xlu0 %558
        %560 = vrot.lane.b32.xlu0 %v527, 32
        %v561 = vpop.permute.xlu0 %560
        %562 = vrot.lane.b32.xlu0 %v528, 32
        %v563 = vpop.permute.xlu0 %562
        %564 = vrot.lane.b32.xlu0 %v529, 32
        %v565 = vpop.permute.xlu0 %564
        %566 = vrot.lane.b32.xlu0 %v530, 32
        %v567 = vpop.permute.xlu0 %566
        %568 = vrot.lane.b32.xlu0 %v531, 32
        %v569 = vpop.permute.xlu0 %568
        %570 = vrot.lane.b32.xlu0 %v532, 32
        %v571 = vpop.permute.xlu0 %570
        %572 = vrot.lane.b32.xlu0 %v533, 32
        %v573 = vpop.permute.xlu0 %572
        %574 = vrot.lane.b32.xlu0 %v534, 32
        %v575 = vpop.permute.xlu0 %574
        %576 = vrot.lane.b32.xlu0 %v535, 32
        %v577 = vpop.permute.xlu0 %576
        %578 = vrot.lane.b32.xlu0 %v536, 32
        %v579 = vpop.permute.xlu0 %578
        %580 = vrot.lane.b32.xlu0 %v537, 32
        %v581 = vpop.permute.xlu0 %580
        %582 = vrot.lane.b32.xlu0 %v538, 32
        %v583 = vpop.permute.xlu0 %582
        %584 = vrot.lane.b32.xlu0 %v539, 32
        %v585 = vpop.permute.xlu0 %584
        %586 = vrot.lane.b32.xlu0 %v540, 32
        %v587 = vpop.permute.xlu0 %586
        %588 = vrot.lane.b32.xlu0 %v541, 32
        %v589 = vpop.permute.xlu0 %588
        %vm606 = vcmask 326912
        %607 = vst.msk [vmem:[#allocation2] sm:$0xff] %vm606, %v559
        %608 = vst.msk [vmem:[#allocation2 + $0x8] sm:$0xff] %vm606, %v561
        %609 = vst.msk [vmem:[#allocation2 + $0x10] sm:$0xff] %vm606, %v563
        %610 = vst.msk [vmem:[#allocation2 + $0x18] sm:$0xff] %vm606, %v565
        %611 = vst.msk [vmem:[#allocation2 + $0x20] sm:$0xff] %vm606, %v567
        %612 = vst.msk [vmem:[#allocation2 + $0x28] sm:$0xff] %vm606, %v569
        %613 = vst.msk [vmem:[#allocation2 + $0x30] sm:$0xff] %vm606, %v571
        %614 = vst.msk [vmem:[#allocation2 + $0x38] sm:$0xff] %vm606, %v573
        %615 = vst.msk [vmem:[#allocation2 + $0x40] sm:$0xff] %vm606, %v575
        %616 = vst.msk [vmem:[#allocation2 + $0x48] sm:$0xff] %vm606, %v577
        %617 = vst.msk [vmem:[#allocation2 + $0x50] sm:$0xff] %vm606, %v579
        %618 = vst.msk [vmem:[#allocation2 + $0x58] sm:$0xff] %vm606, %v581
        %619 = vst.msk [vmem:[#allocation2 + $0x60] sm:$0xff] %vm606, %v583
        %620 = vst.msk [vmem:[#allocation2 + $0x68] sm:$0xff] %vm606, %v585
        %621 = vst.msk [vmem:[#allocation2 + $0x70] sm:$0xff] %vm606, %v587
        %622 = vst.msk [vmem:[#allocation2 + $0x78] sm:$0xff] %vm606, %v589
        %v623 = vld [vmem:[%s428 + $0x2] sm:$0xff]
        %v624 = vld [vmem:[%s428 + $0xa] sm:$0xff]
        %v625 = vld [vmem:[%s428 + $0x1a] sm:$0xff]
        %v626 = vld [vmem:[%s428 + $0x22] sm:$0xff]
        %v627 = vld [vmem:[%s428 + $0x32] sm:$0xff]
        %v628 = vld [vmem:[%s428 + $0x3a] sm:$0xff]
        %v629 = vld [vmem:[%s428 + $0x4a] sm:$0xff]
        %v630 = vld [vmem:[%s428 + $0x52] sm:$0xff]
        %v631 = vld [vmem:[%s428 + $0x62] sm:$0xff]
        %v632 = vld [vmem:[%s428 + $0x6a] sm:$0xff]
        %v633 = vld [vmem:[%s428 + $0x7a] sm:$0xff]
        %v634 = vld [vmem:[%s428 + $0x82] sm:$0xff]
        %v635 = vld [vmem:[%s428 + $0x92] sm:$0xff]
        %v636 = vld [vmem:[%s428 + $0x9a] sm:$0xff]
        %v637 = vld [vmem:[%s428 + $0xaa] sm:$0xff]
        %v638 = vld [vmem:[%s428 + $0xb2] sm:$0xff]
        %655 = vrot.lane.b32.xlu0 %v623, 40
        %v656 = vpop.permute.xlu0 %655
        %657 = vrot.lane.b32.xlu0 %v624, 40
        %v658 = vpop.permute.xlu0 %657
        %659 = vrot.lane.b32.xlu0 %v625, 40
        %v660 = vpop.permute.xlu0 %659
        %661 = vrot.lane.b32.xlu0 %v626, 40
        %v662 = vpop.permute.xlu0 %661
        %663 = vrot.lane.b32.xlu0 %v627, 40
        %v664 = vpop.permute.xlu0 %663
        %665 = vrot.lane.b32.xlu0 %v628, 40
        %v666 = vpop.permute.xlu0 %665
        %667 = vrot.lane.b32.xlu0 %v629, 40
        %v668 = vpop.permute.xlu0 %667
        %669 = vrot.lane.b32.xlu0 %v630, 40
        %v670 = vpop.permute.xlu0 %669
        %671 = vrot.lane.b32.xlu0 %v631, 40
        %v672 = vpop.permute.xlu0 %671
        %673 = vrot.lane.b32.xlu0 %v632, 40
        %v674 = vpop.permute.xlu0 %673
        %675 = vrot.lane.b32.xlu0 %v633, 40
        %v676 = vpop.permute.xlu0 %675
        %677 = vrot.lane.b32.xlu0 %v634, 40
        %v678 = vpop.permute.xlu0 %677
        %679 = vrot.lane.b32.xlu0 %v635, 40
        %v680 = vpop.permute.xlu0 %679
        %681 = vrot.lane.b32.xlu0 %v636, 40
        %v682 = vpop.permute.xlu0 %681
        %683 = vrot.lane.b32.xlu0 %v637, 40
        %v684 = vpop.permute.xlu0 %683
        %685 = vrot.lane.b32.xlu0 %v638, 40
        %v686 = vpop.permute.xlu0 %685
        %vm703 = vcmask 392512
        %704 = vst.msk [vmem:[#allocation2] sm:$0xff] %vm703, %v656
        %705 = vst.msk [vmem:[#allocation2 + $0x8] sm:$0xff] %vm703, %v658
        %706 = vst.msk [vmem:[#allocation2 + $0x10] sm:$0xff] %vm703, %v660
        %707 = vst.msk [vmem:[#allocation2 + $0x18] sm:$0xff] %vm703, %v662
        %708 = vst.msk [vmem:[#allocation2 + $0x20] sm:$0xff] %vm703, %v664
        %709 = vst.msk [vmem:[#allocation2 + $0x28] sm:$0xff] %vm703, %v666
        %710 = vst.msk [vmem:[#allocation2 + $0x30] sm:$0xff] %vm703, %v668
        %711 = vst.msk [vmem:[#allocation2 + $0x38] sm:$0xff] %vm703, %v670
        %712 = vst.msk [vmem:[#allocation2 + $0x40] sm:$0xff] %vm703, %v672
        %713 = vst.msk [vmem:[#allocation2 + $0x48] sm:$0xff] %vm703, %v674
        %714 = vst.msk [vmem:[#allocation2 + $0x50] sm:$0xff] %vm703, %v676
        %715 = vst.msk [vmem:[#allocation2 + $0x58] sm:$0xff] %vm703, %v678
        %716 = vst.msk [vmem:[#allocation2 + $0x60] sm:$0xff] %vm703, %v680
        %717 = vst.msk [vmem:[#allocation2 + $0x68] sm:$0xff] %vm703, %v682
        %718 = vst.msk [vmem:[#allocation2 + $0x70] sm:$0xff] %vm703, %v684
        %719 = vst.msk [vmem:[#allocation2 + $0x78] sm:$0xff] %vm703, %v686
        %s720 = sadd.s32 %s196, 2
        %s721 = smul.u32 %s720, 24
        %s722 = scalar_lea.vmem %s195, %s721
        %v723 = vld [vmem:[%s722] sm:$0xff]
        %v724 = vld [vmem:[%s722 + $0x8] sm:$0xff]
        %v725 = vld [vmem:[%s722 + $0x18] sm:$0xff]
        %v726 = vld [vmem:[%s722 + $0x20] sm:$0xff]
        %v727 = vld [vmem:[%s722 + $0x30] sm:$0xff]
        %v728 = vld [vmem:[%s722 + $0x38] sm:$0xff]
        %v729 = vld [vmem:[%s722 + $0x48] sm:$0xff]
        %v730 = vld [vmem:[%s722 + $0x50] sm:$0xff]
        %v731 = vld [vmem:[%s722 + $0x60] sm:$0xff]
        %v732 = vld [vmem:[%s722 + $0x68] sm:$0xff]
        %v733 = vld [vmem:[%s722 + $0x78] sm:$0xff]
        %v734 = vld [vmem:[%s722 + $0x80] sm:$0xff]
        %v735 = vld [vmem:[%s722 + $0x90] sm:$0xff]
        %v736 = vld [vmem:[%s722 + $0x98] sm:$0xff]
        %v737 = vld [vmem:[%s722 + $0xa8] sm:$0xff]
        %v738 = vld [vmem:[%s722 + $0xb0] sm:$0xff]
        %755 = vrot.lane.b32.xlu0 %v723, 48
        %v756 = vpop.permute.xlu0 %755
        %757 = vrot.lane.b32.xlu0 %v724, 48
        %v758 = vpop.permute.xlu0 %757
        %759 = vrot.lane.b32.xlu0 %v725, 48
        %v760 = vpop.permute.xlu0 %759
        %761 = vrot.lane.b32.xlu0 %v726, 48
        %v762 = vpop.permute.xlu0 %761
        %763 = vrot.lane.b32.xlu0 %v727, 48
        %v764 = vpop.permute.xlu0 %763
        %765 = vrot.lane.b32.xlu0 %v728, 48
        %v766 = vpop.permute.xlu0 %765
        %767 = vrot.lane.b32.xlu0 %v729, 48
        %v768 = vpop.permute.xlu0 %767
        %769 = vrot.lane.b32.xlu0 %v730, 48
        %v770 = vpop.permute.xlu0 %769
        %771 = vrot.lane.b32.xlu0 %v731, 48
        %v772 = vpop.permute.xlu0 %771
        %773 = vrot.lane.b32.xlu0 %v732, 48
        %v774 = vpop.permute.xlu0 %773
        %775 = vrot.lane.b32.xlu0 %v733, 48
        %v776 = vpop.permute.xlu0 %775
        %777 = vrot.lane.b32.xlu0 %v734, 48
        %v778 = vpop.permute.xlu0 %777
        %779 = vrot.lane.b32.xlu0 %v735, 48
        %v780 = vpop.permute.xlu0 %779
        %781 = vrot.lane.b32.xlu0 %v736, 48
        %v782 = vpop.permute.xlu0 %781
        %783 = vrot.lane.b32.xlu0 %v737, 48
        %v784 = vpop.permute.xlu0 %783
        %785 = vrot.lane.b32.xlu0 %v738, 48
        %v786 = vpop.permute.xlu0 %785
        %vm803 = vcmask 458112
        %804 = vst.msk [vmem:[#allocation2] sm:$0xff] %vm803, %v756
        %805 = vst.msk [vmem:[#allocation2 + $0x8] sm:$0xff] %vm803, %v758
        %806 = vst.msk [vmem:[#allocation2 + $0x10] sm:$0xff] %vm803, %v760
        %807 = vst.msk [vmem:[#allocation2 + $0x18] sm:$0xff] %vm803, %v762
        %808 = vst.msk [vmem:[#allocation2 + $0x20] sm:$0xff] %vm803, %v764
        %809 = vst.msk [vmem:[#allocation2 + $0x28] sm:$0xff] %vm803, %v766
        %810 = vst.msk [vmem:[#allocation2 + $0x30] sm:$0xff] %vm803, %v768
        %811 = vst.msk [vmem:[#allocation2 + $0x38] sm:$0xff] %vm803, %v770
        %812 = vst.msk [vmem:[#allocation2 + $0x40] sm:$0xff] %vm803, %v772
        %813 = vst.msk [vmem:[#allocation2 + $0x48] sm:$0xff] %vm803, %v774
        %814 = vst.msk [vmem:[#allocation2 + $0x50] sm:$0xff] %vm803, %v776
        %815 = vst.msk [vmem:[#allocation2 + $0x58] sm:$0xff] %vm803, %v778
        %816 = vst.msk [vmem:[#allocation2 + $0x60] sm:$0xff] %vm803, %v780
        %817 = vst.msk [vmem:[#allocation2 + $0x68] sm:$0xff] %vm803, %v782
        %818 = vst.msk [vmem:[#allocation2 + $0x70] sm:$0xff] %vm803, %v784
        %819 = vst.msk [vmem:[#allocation2 + $0x78] sm:$0xff] %vm803, %v786
        %v820 = vld [vmem:[%s722 + $0x1] sm:$0xff]
        %v821 = vld [vmem:[%s722 + $0x9] sm:$0xff]
        %v822 = vld [vmem:[%s722 + $0x19] sm:$0xff]
        %v823 = vld [vmem:[%s722 + $0x21] sm:$0xff]
        %v824 = vld [vmem:[%s722 + $0x31] sm:$0xff]
        %v825 = vld [vmem:[%s722 + $0x39] sm:$0xff]
        %v826 = vld [vmem:[%s722 + $0x49] sm:$0xff]
        %v827 = vld [vmem:[%s722 + $0x51] sm:$0xff]
        %v828 = vld [vmem:[%s722 + $0x61] sm:$0xff]
        %v829 = vld [vmem:[%s722 + $0x69] sm:$0xff]
        %v830 = vld [vmem:[%s722 + $0x79] sm:$0xff]
        %v831 = vld [vmem:[%s722 + $0x81] sm:$0xff]
        %v832 = vld [vmem:[%s722 + $0x91] sm:$0xff]
        %v833 = vld [vmem:[%s722 + $0x99] sm:$0xff]
        %v834 = vld [vmem:[%s722 + $0xa9] sm:$0xff]
        %v835 = vld [vmem:[%s722 + $0xb1] sm:$0xff]
        %852 = vrot.lane.b32.xlu0 %v820, 56
        %v853 = vpop.permute.xlu0 %852
        %854 = vrot.lane.b32.xlu0 %v821, 56
        %v855 = vpop.permute.xlu0 %854
        %856 = vrot.lane.b32.xlu0 %v822, 56
        %v857 = vpop.permute.xlu0 %856
        %858 = vrot.lane.b32.xlu0 %v823, 56
        %v859 = vpop.permute.xlu0 %858
        %860 = vrot.lane.b32.xlu0 %v824, 56
        %v861 = vpop.permute.xlu0 %860
        %862 = vrot.lane.b32.xlu0 %v825, 56
        %v863 = vpop.permute.xlu0 %862
        %864 = vrot.lane.b32.xlu0 %v826, 56
        %v865 = vpop.permute.xlu0 %864
        %866 = vrot.lane.b32.xlu0 %v827, 56
        %v867 = vpop.permute.xlu0 %866
        %868 = vrot.lane.b32.xlu0 %v828, 56
        %v869 = vpop.permute.xlu0 %868
        %870 = vrot.lane.b32.xlu0 %v829, 56
        %v871 = vpop.permute.xlu0 %870
        %872 = vrot.lane.b32.xlu0 %v830, 56
        %v873 = vpop.permute.xlu0 %872
        %874 = vrot.lane.b32.xlu0 %v831, 56
        %v875 = vpop.permute.xlu0 %874
        %876 = vrot.lane.b32.xlu0 %v832, 56
        %v877 = vpop.permute.xlu0 %876
        %878 = vrot.lane.b32.xlu0 %v833, 56
        %v879 = vpop.permute.xlu0 %878
        %880 = vrot.lane.b32.xlu0 %v834, 56
        %v881 = vpop.permute.xlu0 %880
        %882 = vrot.lane.b32.xlu0 %v835, 56
        %v883 = vpop.permute.xlu0 %882
        %vm900 = vcmask 523712
        %901 = vst.msk [vmem:[#allocation2] sm:$0xff] %vm900, %v853
        %902 = vst.msk [vmem:[#allocation2 + $0x8] sm:$0xff] %vm900, %v855
        %903 = vst.msk [vmem:[#allocation2 + $0x10] sm:$0xff] %vm900, %v857
        %904 = vst.msk [vmem:[#allocation2 + $0x18] sm:$0xff] %vm900, %v859
        %905 = vst.msk [vmem:[#allocation2 + $0x20] sm:$0xff] %vm900, %v861
        %906 = vst.msk [vmem:[#allocation2 + $0x28] sm:$0xff] %vm900, %v863
        %907 = vst.msk [vmem:[#allocation2 + $0x30] sm:$0xff] %vm900, %v865
        %908 = vst.msk [vmem:[#allocation2 + $0x38] sm:$0xff] %vm900, %v867
        %909 = vst.msk [vmem:[#allocation2 + $0x40] sm:$0xff] %vm900, %v869
        %910 = vst.msk [vmem:[#allocation2 + $0x48] sm:$0xff] %vm900, %v871
        %911 = vst.msk [vmem:[#allocation2 + $0x50] sm:$0xff] %vm900, %v873
        %912 = vst.msk [vmem:[#allocation2 + $0x58] sm:$0xff] %vm900, %v875
        %913 = vst.msk [vmem:[#allocation2 + $0x60] sm:$0xff] %vm900, %v877
        %914 = vst.msk [vmem:[#allocation2 + $0x68] sm:$0xff] %vm900, %v879
        %915 = vst.msk [vmem:[#allocation2 + $0x70] sm:$0xff] %vm900, %v881
        %916 = vst.msk [vmem:[#allocation2 + $0x78] sm:$0xff] %vm900, %v883
        %v917 = vld [vmem:[%s722 + $0x2] sm:$0xff]
        %v918 = vld [vmem:[%s722 + $0xa] sm:$0xff]
        %v919 = vld [vmem:[%s722 + $0x1a] sm:$0xff]
        %v920 = vld [vmem:[%s722 + $0x22] sm:$0xff]
        %v921 = vld [vmem:[%s722 + $0x32] sm:$0xff]
        %v922 = vld [vmem:[%s722 + $0x3a] sm:$0xff]
        %v923 = vld [vmem:[%s722 + $0x4a] sm:$0xff]
        %v924 = vld [vmem:[%s722 + $0x52] sm:$0xff]
        %v925 = vld [vmem:[%s722 + $0x62] sm:$0xff]
        %v926 = vld [vmem:[%s722 + $0x6a] sm:$0xff]
        %v927 = vld [vmem:[%s722 + $0x7a] sm:$0xff]
        %v928 = vld [vmem:[%s722 + $0x82] sm:$0xff]
        %v929 = vld [vmem:[%s722 + $0x92] sm:$0xff]
        %v930 = vld [vmem:[%s722 + $0x9a] sm:$0xff]
        %v931 = vld [vmem:[%s722 + $0xaa] sm:$0xff]
        %v932 = vld [vmem:[%s722 + $0xb2] sm:$0xff]
        %949 = vrot.lane.b32.xlu0 %v917, 64
        %v950 = vpop.permute.xlu0 %949
        %951 = vrot.lane.b32.xlu0 %v918, 64
        %v952 = vpop.permute.xlu0 %951
        %953 = vrot.lane.b32.xlu0 %v919, 64
        %v954 = vpop.permute.xlu0 %953
        %955 = vrot.lane.b32.xlu0 %v920, 64
        %v956 = vpop.permute.xlu0 %955
        %957 = vrot.lane.b32.xlu0 %v921, 64
        %v958 = vpop.permute.xlu0 %957
        %959 = vrot.lane.b32.xlu0 %v922, 64
        %v960 = vpop.permute.xlu0 %959
        %961 = vrot.lane.b32.xlu0 %v923, 64
        %v962 = vpop.permute.xlu0 %961
        %963 = vrot.lane.b32.xlu0 %v924, 64
        %v964 = vpop.permute.xlu0 %963
        %965 = vrot.lane.b32.xlu0 %v925, 64
        %v966 = vpop.permute.xlu0 %965
        %967 = vrot.lane.b32.xlu0 %v926, 64
        %v968 = vpop.permute.xlu0 %967
        %969 = vrot.lane.b32.xlu0 %v927, 64
        %v970 = vpop.permute.xlu0 %969
        %971 = vrot.lane.b32.xlu0 %v928, 64
        %v972 = vpop.permute.xlu0 %971
        %973 = vrot.lane.b32.xlu0 %v929, 64
        %v974 = vpop.permute.xlu0 %973
        %975 = vrot.lane.b32.xlu0 %v930, 64
        %v976 = vpop.permute.xlu0 %975
        %977 = vrot.lane.b32.xlu0 %v931, 64
        %v978 = vpop.permute.xlu0 %977
        %979 = vrot.lane.b32.xlu0 %v932, 64
        %v980 = vpop.permute.xlu0 %979
        %vm997 = vcmask 589312
        %998 = vst.msk [vmem:[#allocation2] sm:$0xff] %vm997, %v950
        %999 = vst.msk [vmem:[#allocation2 + $0x8] sm:$0xff] %vm997, %v952
        %1000 = vst.msk [vmem:[#allocation2 + $0x10] sm:$0xff] %vm997, %v954
        %1001 = vst.msk [vmem:[#allocation2 + $0x18] sm:$0xff] %vm997, %v956
        %1002 = vst.msk [vmem:[#allocation2 + $0x20] sm:$0xff] %vm997, %v958
        %1003 = vst.msk [vmem:[#allocation2 + $0x28] sm:$0xff] %vm997, %v960
        %1004 = vst.msk [vmem:[#allocation2 + $0x30] sm:$0xff] %vm997, %v962
        %1005 = vst.msk [vmem:[#allocation2 + $0x38] sm:$0xff] %vm997, %v964
        %1006 = vst.msk [vmem:[#allocation2 + $0x40] sm:$0xff] %vm997, %v966
        %1007 = vst.msk [vmem:[#allocation2 + $0x48] sm:$0xff] %vm997, %v968
        %1008 = vst.msk [vmem:[#allocation2 + $0x50] sm:$0xff] %vm997, %v970
        %1009 = vst.msk [vmem:[#allocation2 + $0x58] sm:$0xff] %vm997, %v972
        %1010 = vst.msk [vmem:[#allocation2 + $0x60] sm:$0xff] %vm997, %v974
        %1011 = vst.msk [vmem:[#allocation2 + $0x68] sm:$0xff] %vm997, %v976
        %1012 = vst.msk [vmem:[#allocation2 + $0x70] sm:$0xff] %vm997, %v978
        %1013 = vst.msk [vmem:[#allocation2 + $0x78] sm:$0xff] %vm997, %v980
        %v1014 = vld [vmem:[#allocation2] sm:$0xff]
        %v1015 = vld [vmem:[#allocation2 + $0x8] sm:$0xff]
        %v1016 = vld [vmem:[#allocation2 + $0x10] sm:$0xff]
        %v1017 = vld [vmem:[#allocation2 + $0x18] sm:$0xff]
        %v1018 = vld [vmem:[#allocation2 + $0x20] sm:$0xff]
        %v1019 = vld [vmem:[#allocation2 + $0x28] sm:$0xff]
        %v1020 = vld [vmem:[#allocation2 + $0x30] sm:$0xff]
        %v1021 = vld [vmem:[#allocation2 + $0x38] sm:$0xff]
        %v1022 = vld [vmem:[#allocation2 + $0x40] sm:$0xff]
        %v1023 = vld [vmem:[#allocation2 + $0x48] sm:$0xff]
        %v1024 = vld [vmem:[#allocation2 + $0x50] sm:$0xff]
        %v1025 = vld [vmem:[#allocation2 + $0x58] sm:$0xff]
        %v1026 = vld [vmem:[#allocation2 + $0x60] sm:$0xff]
        %v1027 = vld [vmem:[#allocation2 + $0x68] sm:$0xff]
        %v1028 = vld [vmem:[#allocation2 + $0x70] sm:$0xff]
        %v1029 = vld [vmem:[#allocation2 + $0x78] sm:$0xff]
        %v1030 = vld [vmem:[%s1] sm:$0xff]
        %v1031 = vld [vmem:[%s1 + $0x8] sm:$0xff]
        %v1032 = vld [vmem:[%s1 + $0x10] sm:$0xff]
        %v1033 = vld [vmem:[%s1 + $0x18] sm:$0xff]
        %v1034 = vld [vmem:[%s1 + $0x20] sm:$0xff]
        %v1035 = vld [vmem:[%s1 + $0x28] sm:$0xff]
        %v1036 = vld [vmem:[%s1 + $0x30] sm:$0xff]
        %v1037 = vld [vmem:[%s1 + $0x38] sm:$0xff]
        %v1038 = vld [vmem:[%s1 + $0x40] sm:$0xff]
        %vm1039 = vcmask 588800
        %v1041 = vsel %vm1039, %v1014, 0
        %v1044 = vsel %vm1039, %v1015, 0
        %v1047 = vsel %vm1039, %v1016, 0
        %v1050 = vsel %vm1039, %v1017, 0
        %v1053 = vsel %vm1039, %v1018, 0
        %v1056 = vsel %vm1039, %v1019, 0
        %v1059 = vsel %vm1039, %v1020, 0
        %v1062 = vsel %vm1039, %v1021, 0
        %v1065 = vsel %vm1039, %v1022, 0
        %v1068 = vsel %vm1039, %v1023, 0
        %v1071 = vsel %vm1039, %v1024, 0
        %v1074 = vsel %vm1039, %v1025, 0
        %v1077 = vsel %vm1039, %v1026, 0
        %v1080 = vsel %vm1039, %v1027, 0
        %v1083 = vsel %vm1039, %v1028, 0
        %v1086 = vsel %vm1039, %v1029, 0
        %1088 = vmatprep.subr.mxu0 0.0
        %1089 = vmatpush1.msra.mxu0 %v1030
        %1090 = vmatprep.subr.mxu0 0.0
        %1091 = vmatpush1.msra.mxu0 %v1031
        %1092 = vmatprep.subr.mxu0 0.0
        %1093 = vmatpush1.msra.mxu0 %v1032
        %1094 = vmatprep.subr.mxu0 0.0
        %1095 = vmatpush1.msra.mxu0 %v1033
        %1096 = vmatprep.subr.mxu0 0.0
        %1097 = vmatpush1.msra.mxu0 %v1034
        %1098 = vmatprep.subr.mxu0 0.0
        %1099 = vmatpush1.msra.mxu0 %v1035
        %1100 = vmatprep.subr.mxu0 0.0
        %1101 = vmatpush1.msra.mxu0 %v1036
        %1102 = vmatprep.subr.mxu0 0.0
        %1103 = vmatpush1.msra.mxu0 %v1037
        %1104 = vmatprep.subr.mxu0 0.0
        %1105 = vmatpush1.msra.mxu0 %v1038
        %1106 = vmatprep.subr.mxu0 0.0
        %1107 = vmatpush1.msra.mxu0 0.0
        %1108 = vmatprep.subr.mxu0 0.0
        %1109 = vmatpush1.msra.mxu0 0.0
        %1110 = vmatprep.subr.mxu0 0.0
        %1111 = vmatpush1.msra.mxu0 0.0
        %1112 = vmatprep.subr.mxu0 0.0
        %1113 = vmatpush1.msra.mxu0 0.0
        %1114 = vmatprep.subr.mxu0 0.0
        %1115 = vmatpush1.msra.mxu0 0.0
        %1116 = vmatprep.subr.mxu0 0.0
        %1117 = vmatpush1.msra.mxu0 0.0
        %1118 = vmatprep.subr.mxu0 0.0
        %1119 = vmatpush1.msra.mxu0 0.0
        %1120 = vmatprep.subr.mxu0 0.0
        %1121 = vmatpush1.msra.mxu0 0.0
        %1122 = vmatprep.subr.mxu0 0.0
        %1123 = vmatpush1.msra.mxu0 0.0
        %1124 = vmatprep.subr.mxu0 0.0
        %1125 = vmatpush1.msra.mxu0 0.0
        %1126 = vmatprep.subr.mxu0 0.0
        %1127 = vmatpush1.msra.mxu0 0.0
        %1128 = vmatprep.subr.mxu0 0.0
        %1129 = vmatpush1.msra.mxu0 0.0
        %1130 = vmatprep.subr.mxu0 0.0
        %1131 = vmatpush1.msra.mxu0 0.0
        %1132 = vmatprep.subr.mxu0 0.0
        %1133 = vmatpush1.msra.mxu0 0.0
        %1134 = vmatprep.subr.mxu0 0.0
        %1135 = vmatpush1.msra.mxu0 0.0
        %1136 = vmatprep.subr.mxu0 0.0
        %1137 = vmatpush1.msra.mxu0 0.0
        %1138 = vmatprep.subr.mxu0 0.0
        %1139 = vmatpush1.msra.mxu0 0.0
        %1140 = vmatprep.subr.mxu0 0.0
        %1141 = vmatpush1.msra.mxu0 0.0
        %1142 = vmatprep.subr.mxu0 0.0
        %1143 = vmatpush1.msra.mxu0 0.0
        %1144 = vmatprep.subr.mxu0 0.0
        %1145 = vmatpush1.msra.mxu0 0.0
        %1146 = vmatprep.subr.mxu0 0.0
        %1147 = vmatpush1.msra.mxu0 0.0
        %1148 = vmatprep.subr.mxu0 0.0
        %1149 = vmatpush1.msra.mxu0 0.0
        %1150 = vmatprep.subr.mxu0 0.0
        %1151 = vmatpush1.msra.mxu0 0.0
        %1152 = vmatprep.mubr.f32.mxu0 0.0
        %1153 = vmatmul.mubr.f32.gmra.mrb[0].mxu0 %v1041
        %v1154 = vpop.f32.mrb[0].mxu0
        %v1155 = vadd.f32 0.0, %v1154
        %v1156 = vpop.f32.mrb[0].mxu0
        %1157 = vmatprep.mubr.f32.mxu0 0.0
        %1158 = vmatmul.mubr.f32.gmra.mrb[0].mxu0 %v1044
        %v1159 = vpop.f32.mrb[0].mxu0
        %v1160 = vadd.f32 0.0, %v1159
        %v1161 = vpop.f32.mrb[0].mxu0
        %1162 = vmatprep.mubr.f32.mxu0 0.0
        %1163 = vmatmul.mubr.f32.gmra.mrb[0].mxu0 %v1047
        %v1164 = vpop.f32.mrb[0].mxu0
        %v1165 = vadd.f32 0.0, %v1164
        %v1166 = vpop.f32.mrb[0].mxu0
        %1167 = vmatprep.mubr.f32.mxu0 0.0
        %1168 = vmatmul.mubr.f32.gmra.mrb[0].mxu0 %v1050
        %v1169 = vpop.f32.mrb[0].mxu0
        %v1170 = vadd.f32 0.0, %v1169
        %v1171 = vpop.f32.mrb[0].mxu0
        %1172 = vmatprep.mubr.f32.mxu0 0.0
        %1173 = vmatmul.mubr.f32.gmra.mrb[0].mxu0 %v1053
        %v1174 = vpop.f32.mrb[0].mxu0
        %v1175 = vadd.f32 0.0, %v1174
        %v1176 = vpop.f32.mrb[0].mxu0
        %1177 = vmatprep.mubr.f32.mxu0 0.0
        %1178 = vmatmul.mubr.f32.gmra.mrb[0].mxu0 %v1056
        %v1179 = vpop.f32.mrb[0].mxu0
        %v1180 = vadd.f32 0.0, %v1179
        %v1181 = vpop.f32.mrb[0].mxu0
        %1182 = vmatprep.mubr.f32.mxu0 0.0
        %1183 = vmatmul.mubr.f32.gmra.mrb[0].mxu0 %v1059
        %v1184 = vpop.f32.mrb[0].mxu0
        %v1185 = vadd.f32 0.0, %v1184
        %v1186 = vpop.f32.mrb[0].mxu0
        %1187 = vmatprep.mubr.f32.mxu0 0.0
        %1188 = vmatmul.mubr.f32.gmra.mrb[0].mxu0 %v1062
        %v1189 = vpop.f32.mrb[0].mxu0
        %v1190 = vadd.f32 0.0, %v1189
        %v1191 = vpop.f32.mrb[0].mxu0
        %1192 = vmatprep.mubr.f32.mxu0 0.0
        %1193 = vmatmul.mubr.f32.gmra.mrb[0].mxu0 %v1065
        %v1194 = vpop.f32.mrb[0].mxu0
        %v1195 = vadd.f32 0.0, %v1194
        %v1196 = vpop.f32.mrb[0].mxu0
        %1197 = vmatprep.mubr.f32.mxu0 0.0
        %1198 = vmatmul.mubr.f32.gmra.mrb[0].mxu0 %v1068
        %v1199 = vpop.f32.mrb[0].mxu0
        %v1200 = vadd.f32 0.0, %v1199
        %v1201 = vpop.f32.mrb[0].mxu0
        %1202 = vmatprep.mubr.f32.mxu0 0.0
        %1203 = vmatmul.mubr.f32.gmra.mrb[0].mxu0 %v1071
        %v1204 = vpop.f32.mrb[0].mxu0
        %v1205 = vadd.f32 0.0, %v1204
        %v1206 = vpop.f32.mrb[0].mxu0
        %1207 = vmatprep.mubr.f32.mxu0 0.0
        %1208 = vmatmul.mubr.f32.gmra.mrb[0].mxu0 %v1074
        %v1209 = vpop.f32.mrb[0].mxu0
        %v1210 = vadd.f32 0.0, %v1209
        %v1211 = vpop.f32.mrb[0].mxu0
        %1212 = vmatprep.mubr.f32.mxu0 0.0
        %1213 = vmatmul.mubr.f32.gmra.mrb[0].mxu0 %v1077
        %v1214 = vpop.f32.mrb[0].mxu0
        %v1215 = vadd.f32 0.0, %v1214
        %v1216 = vpop.f32.mrb[0].mxu0
        %1217 = vmatprep.mubr.f32.mxu0 0.0
        %1218 = vmatmul.mubr.f32.gmra.mrb[0].mxu0 %v1080
        %v1219 = vpop.f32.mrb[0].mxu0
        %v1220 = vadd.f32 0.0, %v1219
        %v1221 = vpop.f32.mrb[0].mxu0
        %1222 = vmatprep.mubr.f32.mxu0 0.0
        %1223 = vmatmul.mubr.f32.gmra.mrb[0].mxu0 %v1083
        %v1224 = vpop.f32.mrb[0].mxu0
        %v1225 = vadd.f32 0.0, %v1224
        %v1226 = vpop.f32.mrb[0].mxu0
        %1227 = vmatprep.mubr.f32.mxu0 0.0
        %1228 = vmatmul.mubr.f32.gmra.mrb[0].mxu0 %v1086
        %v1229 = vpop.f32.mrb[0].mxu0
        %v1230 = vadd.f32 0.0, %v1229
        %v1231 = vpop.f32.mrb[0].mxu0
        %1232 = vdwg.mxu0
        %1233 = vst [vmem:[%s183] sm:$0xff] %v1155
        %1234 = vst [vmem:[%s183 + $0x8] sm:$0xff] %v1160
        %1235 = vst [vmem:[%s183 + $0x10] sm:$0xff] %v1165
        %1236 = vst [vmem:[%s183 + $0x18] sm:$0xff] %v1170
        %1237 = vst [vmem:[%s183 + $0x20] sm:$0xff] %v1175
        %1238 = vst [vmem:[%s183 + $0x28] sm:$0xff] %v1180
        %1239 = vst [vmem:[%s183 + $0x30] sm:$0xff] %v1185
        %1240 = vst [vmem:[%s183 + $0x38] sm:$0xff] %v1190
        %1241 = vst [vmem:[%s183 + $0x40] sm:$0xff] %v1195
        %1242 = vst [vmem:[%s183 + $0x48] sm:$0xff] %v1200
        %1243 = vst [vmem:[%s183 + $0x50] sm:$0xff] %v1205
        %1244 = vst [vmem:[%s183 + $0x58] sm:$0xff] %v1210
        %1245 = vst [vmem:[%s183 + $0x60] sm:$0xff] %v1215
        %1246 = vst [vmem:[%s183 + $0x68] sm:$0xff] %v1220
        %1247 = vst [vmem:[%s183 + $0x70] sm:$0xff] %v1225
        %1248 = vst [vmem:[%s183 + $0x78] sm:$0xff] %v1230
        %v1249 = vadd.f32 %v1155, %v1160
        %v1250 = vadd.f32 %v1249, %v1165
        %v1251 = vadd.f32 %v1250, %v1170
        %v1252 = vadd.f32 %v1251, %v1175
        %v1253 = vadd.f32 %v1252, %v1180
        %v1254 = vadd.f32 %v1253, %v1185
        %v1255 = vadd.f32 %v1254, %v1190
        %v1256 = vadd.f32 %v1255, %v1195
        %v1257 = vadd.f32 %v1256, %v1200
        %v1258 = vadd.f32 %v1257, %v1205
        %v1259 = vadd.f32 %v1258, %v1210
        %v1260 = vadd.f32 %v1259, %v1215
        %v1261 = vadd.f32 %v1260, %v1220
        %v1262 = vadd.f32 %v1261, %v1225
        %v1263 = vadd.f32 %v1262, %v1230
        %v1264 = vrot.slane %v1263, 4
        %v1265 = vadd.f32 %v1263, %v1264
        %v1266 = vrot.slane %v1265, 2
        %v1267 = vadd.f32 %v1265, %v1266
        %v1268 = vrot.slane %v1267, 1
        %v1269 = vadd.f32 %v1267, %v1268
        %1270 = vst [vmem:[%s190] sm:$0x1] %v1269
        %v1271 = vmul.f32 %v1155, %v1155
        %v1272 = vmul.f32 %v1160, %v1160
        %v1273 = vmul.f32 %v1165, %v1165
        %v1274 = vmul.f32 %v1170, %v1170
        %v1275 = vmul.f32 %v1175, %v1175
        %v1276 = vmul.f32 %v1180, %v1180
        %v1277 = vmul.f32 %v1185, %v1185
        %v1278 = vmul.f32 %v1190, %v1190
        %v1279 = vmul.f32 %v1195, %v1195
        %v1280 = vmul.f32 %v1200, %v1200
        %v1281 = vmul.f32 %v1205, %v1205
        %v1282 = vmul.f32 %v1210, %v1210
        %v1283 = vmul.f32 %v1215, %v1215
        %v1284 = vmul.f32 %v1220, %v1220
        %v1285 = vmul.f32 %v1225, %v1225
        %v1286 = vmul.f32 %v1230, %v1230
        %v1287 = vadd.f32 %v1271, %v1272
        %v1288 = vadd.f32 %v1287, %v1273
        %v1289 = vadd.f32 %v1288, %v1274
        %v1290 = vadd.f32 %v1289, %v1275
        %v1291 = vadd.f32 %v1290, %v1276
        %v1292 = vadd.f32 %v1291, %v1277
        %v1293 = vadd.f32 %v1292, %v1278
        %v1294 = vadd.f32 %v1293, %v1279
        %v1295 = vadd.f32 %v1294, %v1280
        %v1296 = vadd.f32 %v1295, %v1281
        %v1297 = vadd.f32 %v1296, %v1282
        %v1298 = vadd.f32 %v1297, %v1283
        %v1299 = vadd.f32 %v1298, %v1284
        %v1300 = vadd.f32 %v1299, %v1285
        %v1301 = vadd.f32 %v1300, %v1286
        %v1302 = vrot.slane %v1301, 4
        %v1303 = vadd.f32 %v1301, %v1302
        %v1304 = vrot.slane %v1303, 2
        %v1305 = vadd.f32 %v1303, %v1304
        %v1306 = vrot.slane %v1305, 1
        %v1307 = vadd.f32 %v1305, %v1306
        %1308 = vst [vmem:[%s190 + $0x1] sm:$0x1] %v1307
        %s1309 = sand.u32 %s90, 1
        %s1310 = scalar_lea.sflag [#allocation4], %s1309
        %s1311 = sand.u32 %s90, 1
        %s1312 = smul.addr %s1311, 128
        %s1313 = scalar_lea.vmem [#allocation3], %s1312
        %s1314 = sand.u32 %s118, 1
        %s1315 = scalar_lea.sflag [#allocation6], %s1314
        %s1316 = sand.u32 %s118, 1
        %s1317 = smul.addr %s1316, 2
        %s1318 = scalar_lea.vmem [#allocation5], %s1317
        // Predicated region
        $region29: #{tpu_custom_call.1} parent=27 // pred_check
          %p1319 = pneg %p100
        $region30: #{tpu_custom_call.1} parent=27 // pred_check_branch
          %1321 = sbr.rel (%p1319) target = $region32
        $region31: #{tpu_custom_call.1} parent=27 // pred_region
          %s1323 = ssub.s32 2048, 2048
          %1324 = vsyncadd %s1310, %s1323
          %s1325 = smul.addr %s26, 16
          %s1326 = smul.addr %s25, 32
          %s1327 = sadd.s32 %s1325, %s1326
          %s1328 = smul.addr %s1327, 128
          %s1329 = scalar_lea.hbm %s2, %s1328
          %s1330 = sshll.u32 %s1313, 4
          %s1331 = int_to_ptr.vmem [resolvable:$true] %s1330
          %1336 = dma.vmem_to_hbm [thread:$0]  %s1331, 2048, %s1329, %s1310, 128, 128, 8
        $region32: #{tpu_custom_call.1} parent=27 // pred_fallthru
          _
        // Predicated region
        $region33: #{tpu_custom_call.1} parent=27 // pred_check
          %p1337 = pneg %p128
        $region34: #{tpu_custom_call.1} parent=27 // pred_check_branch
          %1339 = sbr.rel (%p1337) target = $region36
        $region35: #{tpu_custom_call.1} parent=27 // pred_region
          %s1341 = ssub.s32 32, 32
          %1342 = vsyncadd %s1315, %s1341
          %s1343 = smul.addr %s25, 2
          %s1344 = sadd.s32 %s26, %s1343
          %s1345 = smul.addr %s1344, 32
          %s1346 = scalar_lea.hbm %s3, %s1345
          %s1348 = sshll.u32 %s1318, 4
          %s1349 = int_to_ptr.vmem [resolvable:$true] %s1348
          %1351 = dma.vmem_to_hbm [thread:$0]  %s1349, 32, %s1346, %s1315
        $region36: #{tpu_custom_call.1} parent=27 // pred_fallthru
          _
      $region28: #{tpu_custom_call.1} parent=5 // pred_fallthru
        _
      %p1352 = scmp.le.s32.totalorder 2, %s16
      // Predicated region
      $region37: #{tpu_custom_call.1} parent=5 // pred_check
        %p1353 = pneg %p1352
      $region38: #{tpu_custom_call.1} parent=5 // pred_check_branch
        %1355 = sbr.rel (%p1353) target = $region40
      $region39: #{tpu_custom_call.1} parent=5 // pred_region
        %s1356 = ssub.s32 %s16, 2
        // Predicated region
        $region41: #{tpu_custom_call.1} parent=39 // pred_check
          %p1357 = pneg %p106
        $region42: #{tpu_custom_call.1} parent=39 // pred_check_branch
          %1359 = sbr.rel (%p1357) target = $region44
        $region43: #{tpu_custom_call.1} parent=39 // pred_region
          %s1360 = sand.u32 %s91, 1
          %s1361 = scalar_lea.sflag [#allocation4], %s1360
          %s1362 = sand.u32 %s91, 1
          %s1363 = smul.addr %s1362, 128
          %s1364 = scalar_lea.vmem [#allocation3], %s1363
          %1365 = dma.done %s1361, 2048
        $region44: #{tpu_custom_call.1} parent=39 // pred_fallthru
          _
        // Predicated region
        $region45: #{tpu_custom_call.1} parent=39 // pred_check
          %p1366 = pneg %p134
        $region46: #{tpu_custom_call.1} parent=39 // pred_check_branch
          %1368 = sbr.rel (%p1366) target = $region48
        $region47: #{tpu_custom_call.1} parent=39 // pred_region
          %s1369 = sand.u32 %s119, 1
          %s1370 = scalar_lea.sflag [#allocation6], %s1369
          %s1371 = sand.u32 %s119, 1
          %s1372 = smul.addr %s1371, 2
          %s1373 = scalar_lea.vmem [#allocation5], %s1372
          %1374 = dma.done %s1370, 32
        $region48: #{tpu_custom_call.1} parent=39 // pred_fallthru
          _
      $region40: #{tpu_custom_call.1} parent=5 // pred_fallthru
        _
    $region6: #{tpu_custom_call.1} parent=1 // loop_footer
      %s20 = sadd.s32 1, %s16
    $region7: #{tpu_custom_call.1} parent=1 // loop_footer_branch
      %15 = sbr.rel target = $region3
    $region8: #{tpu_custom_call.1} parent=1 // loop_exit
      _
    %1375 = vsyncpa [#allocation4], 1
    %s1376 = scalar_lea.sflag [#allocation4], 1
    %1377 = vsyncpa %s1376, 1
    %1378 = vsyncpa [#allocation6], 1
    %s1379 = scalar_lea.sflag [#allocation6], 1
    %1380 = vsyncpa %s1379, 1

</llo_original>
